<compile_context>
chip_gen: v7x
topology: tpu7x:2x2x1
jax: 0.10.0
libtpu: 0.0.40
codegen_flags: <defaults>
</compile_context>

<pallas_src>
import jax
import jax.numpy as jnp
from jax import lax
from jax.experimental import pallas as pl
from jax.experimental.pallas import tpu as pltpu


# ----------------------------- Pallas kernel -------------------------------

def _make_conv_elu_kernel(kh, kw):
    ph, pw = (kh - 1) // 2, (kw - 1) // 2     # 'same' padding (odd kernels)

    def kernel(x_ref, w_ref, b_ref, o_ref, xpad_ref):
        # x_ref:    (1, H, W, Cin)          bf16 NHWC input tile (one image)
        # w_ref:    (Cout, KH*KW*Cin)       bf16 weights, K ordered (dy,dx,cin)
        # b_ref:    (Cout, 1)               f32 bias
        # o_ref:    (1, Cout, H*W)          f32 output, NCHW-flat, lane-dense
        # xpad_ref: (H+KH-1, W+KW-1, Cin)   f32 scratch for in-kernel padding
        _, h, w, cin = x_ref.shape
        cout = o_ref.shape[1]

        # ---- in-kernel 'same' padding: zero halo, write interior ----------
        xpad_ref[...] = jnp.zeros(xpad_ref.shape, xpad_ref.dtype)
        xpad_ref[ph:ph + h, pw:pw + w, :] = x_ref[0].astype(xpad_ref.dtype)
        xp = xpad_ref[...]

        # ---- im2col: stack the KH*KW taps along K -> single MXU matmul ----
        taps = []
        for dy in range(kh):
            for dx in range(kw):
                taps.append(xp[dy:dy + h, dx:dx + w, :].reshape(h * w, cin))
        patches = jnp.concatenate(taps, axis=-1).astype(jnp.bfloat16)  # (H*W, K)

        # (Cout, K) . (H*W, K)^T -> (Cout, H*W): result is already NCHW and
        # lane-dense; f32 accumulation on the MXU.
        acc = lax.dot_general(
            w_ref[...], patches,
            dimension_numbers=(((1,), (1,)), ((), ())),
            preferred_element_type=jnp.float32)

        acc = acc + b_ref[...]                                  # (Cout,1) bcast
        acc = jnp.where(acc > 0, acc, jnp.exp(acc) - 1.0)       # ELU(alpha=1)
        o_ref[...] = acc[None].astype(o_ref.dtype)

    return kernel


# ----------------------------- wrapper --------------------------------------

def conv_same_elu(x_nchw, w_oihw, bias):
    """Forward of Conv(in, out, k=3, groups=1, padding='same', act=ELU, bn=False)."""
    n, cin, h, w = x_nchw.shape
    cout, cin_w, kh, kw = w_oihw.shape
    assert cin_w == cin, "groups != 1 not supported"

    # Input side only: NCHW -> NHWC + bf16 (halves the activation DMA).
    x_nhwc = jnp.transpose(x_nchw, (0, 2, 3, 1)).astype(jnp.bfloat16)
    # OIHW -> (Cout, KH*KW*Cin) with K ordering (dy, dx, cin) matching im2col.
    w_slab = jnp.transpose(w_oihw, (0, 2, 3, 1)).reshape(cout, kh * kw * cin)
    w_slab = w_slab.astype(jnp.bfloat16)
    b2 = bias.reshape(cout, 1).astype(jnp.float32)

    out = pl.pallas_call(
        _make_conv_elu_kernel(kh, kw),
        out_shape=jax.ShapeDtypeStruct((n, cout, h * w), jnp.float32),
        grid=(n,),
        in_specs=[
            pl.BlockSpec((1, h, w, cin), lambda i: (i, 0, 0, 0)),
            pl.BlockSpec((cout, kh * kw * cin), lambda i: (0, 0)),
            pl.BlockSpec((cout, 1), lambda i: (0, 0)),
        ],
        out_specs=pl.BlockSpec((1, cout, h * w), lambda i: (i, 0, 0)),
        scratch_shapes=[
            pltpu.VMEM((h + kh - 1, w + kw - 1, cin), jnp.float32),
        ],
        compiler_params=pltpu.CompilerParams(
            dimension_semantics=("parallel",)),
    )(x_nhwc, w_slab, b2)

    # (N, Cout, H*W) -> (N, Cout, H, W): contiguous reshape, no transpose.
    return out.reshape(n, cout, h, w)


# ----------------------------- reference ------------------------------------

def conv_reference(x_nchw, w_oihw, bias):
    y = lax.conv_general_dilated(
        x_nchw, w_oihw, (1, 1), "SAME",
        dimension_numbers=("NCHW", "OIHW", "NCHW"))
    y = y + bias[None, :, None, None]
    return jnp.where(y > 0, y, jnp.expm1(y))        # ELU(alpha=1)


# ----------------------------- main ------------------------------------------

if __name__ == "__main__":
    N, C_IN, C_OUT, H, W = 2, 4, 8, 16, 16

    key = jax.random.PRNGKey(0)
    kx, kw_, kb = jax.random.split(key, 3)
    # Parameters in PyTorch layouts (OIHW weight, (O,) bias), deterministic.
    weight = 0.1 * jax.random.normal(kw_, (C_OUT, C_IN, 3, 3), jnp.float32)
    b = 0.1 * jax.random.normal(kb, (C_OUT,), jnp.float32)
    x = jax.random.normal(kx, (N, C_IN, H, W), jnp.float32)

    y = jax.jit(conv_same_elu)(x, weight, b)
    jax.block_until_ready(y)

    assert y.shape == (N, C_OUT, H, W), y.shape
    y_ref = conv_reference(x, weight, b)
    # bf16 MXU inputs (f32 accumulate) -> loosened tolerance vs. f32 reference.
    err = float(jnp.max(jnp.abs(y - y_ref)))
    assert jnp.allclose(y, y_ref, rtol=2e-2, atol=2e-2), err

    print("KERNEL_OK")
</pallas_src>

<mosaic_0001>
module attributes {stable_mosaic.version = 11 : i64} {
  func.func @kernel(%arg0: i32, %arg1: memref<1x16x16x4xbf16, #tpu.memory_space<vmem>>, %arg2: memref<8x36xbf16, #tpu.memory_space<vmem>>, %arg3: memref<8x1xf32, #tpu.memory_space<vmem>>, %arg4: memref<1x8x256xf32, #tpu.memory_space<vmem>>, %arg5: memref<18x18x4xf32, #tpu.memory_space<vmem>>) attributes {dimension_semantics = [#tpu.dimension_semantics<parallel>], iteration_bounds = array<i64: 2>, scalar_prefetch = 0 : i64, scratch_operands = 1 : i64, tpu.core_type = #tpu.core_type<tc>, window_params = [{transform_indices = @transform_0, window_bounds = array<i64: 1, 16, 16, 4>}, {pipeline_mode = #tpu.pipeline_mode<synchronous>, transform_indices = @transform_1, window_bounds = array<i64: 8, 36>}, {pipeline_mode = #tpu.pipeline_mode<synchronous>, transform_indices = @transform_2, window_bounds = array<i64: 8, 1>}, {transform_indices = @transform_3, window_bounds = array<i64: 1, 8, 256>}]} {
    %cst = arith.constant 0.000000e+00 : f32
    %0 = vector.broadcast %cst : f32 to vector<18x18x4xf32>
    %c0 = arith.constant 0 : index
    %c0_0 = arith.constant 0 : index
    %c0_1 = arith.constant 0 : index
    %1 = vector.load %arg5[%c0, %c0_0, %c0_1] : memref<18x18x4xf32, #tpu.memory_space<vmem>>, vector<18x18x4xf32>
    tpu.vector_store %arg5[%c0, %c0_0, %c0_1], %0 {strides = array<i32>} : memref<18x18x4xf32, #tpu.memory_space<vmem>>, vector<18x18x4xf32>,
    %c0_2 = arith.constant 0 : index
    %c0_3 = arith.constant 0 : index
    %c0_4 = arith.constant 0 : index
    %c0_5 = arith.constant 0 : index
    %2 = vector.load %arg1[%c0_2, %c0_3, %c0_4, %c0_5] : memref<1x16x16x4xbf16, #tpu.memory_space<vmem>>, vector<1x16x16x4xbf16>
    %3 = vector.shape_cast %2 : vector<1x16x16x4xbf16> to vector<16x16x4xbf16>
    %4 = arith.extf %3 : vector<16x16x4xbf16> to vector<16x16x4xf32>
    %c1 = arith.constant 1 : index
    %c1_6 = arith.constant 1 : index
    %c0_7 = arith.constant 0 : index
    %5 = vector.load %arg5[%c1, %c1_6, %c0_7] : memref<18x18x4xf32, #tpu.memory_space<vmem>>, vector<16x16x4xf32>
    tpu.vector_store %arg5[%c1, %c1_6, %c0_7], %4 {strides = array<i32>} : memref<18x18x4xf32, #tpu.memory_space<vmem>>, vector<16x16x4xf32>,
    %c0_8 = arith.constant 0 : index
    %c0_9 = arith.constant 0 : index
    %c0_10 = arith.constant 0 : index
    %6 = vector.load %arg5[%c0_8, %c0_9, %c0_10] : memref<18x18x4xf32, #tpu.memory_space<vmem>>, vector<18x18x4xf32>
    %7 = vector.extract_strided_slice %6 {offsets = [0, 0, 0], sizes = [16, 16, 4], strides = [1, 1, 1]} : vector<18x18x4xf32> to vector<16x16x4xf32>
    %8 = vector.shape_cast %7 : vector<16x16x4xf32> to vector<256x4xf32>
    %9 = vector.extract_strided_slice %6 {offsets = [0, 1, 0], sizes = [16, 16, 4], strides = [1, 1, 1]} : vector<18x18x4xf32> to vector<16x16x4xf32>
    %10 = vector.shape_cast %9 : vector<16x16x4xf32> to vector<256x4xf32>
    %11 = vector.extract_strided_slice %6 {offsets = [0, 2, 0], sizes = [16, 16, 4], strides = [1, 1, 1]} : vector<18x18x4xf32> to vector<16x16x4xf32>
    %12 = vector.shape_cast %11 : vector<16x16x4xf32> to vector<256x4xf32>
    %13 = vector.extract_strided_slice %6 {offsets = [1, 0, 0], sizes = [16, 16, 4], strides = [1, 1, 1]} : vector<18x18x4xf32> to vector<16x16x4xf32>
    %14 = vector.shape_cast %13 : vector<16x16x4xf32> to vector<256x4xf32>
    %15 = vector.extract_strided_slice %6 {offsets = [1, 1, 0], sizes = [16, 16, 4], strides = [1, 1, 1]} : vector<18x18x4xf32> to vector<16x16x4xf32>
    %16 = vector.shape_cast %15 : vector<16x16x4xf32> to vector<256x4xf32>
    %17 = vector.extract_strided_slice %6 {offsets = [1, 2, 0], sizes = [16, 16, 4], strides = [1, 1, 1]} : vector<18x18x4xf32> to vector<16x16x4xf32>
    %18 = vector.shape_cast %17 : vector<16x16x4xf32> to vector<256x4xf32>
    %19 = vector.extract_strided_slice %6 {offsets = [2, 0, 0], sizes = [16, 16, 4], strides = [1, 1, 1]} : vector<18x18x4xf32> to vector<16x16x4xf32>
    %20 = vector.shape_cast %19 : vector<16x16x4xf32> to vector<256x4xf32>
    %21 = vector.extract_strided_slice %6 {offsets = [2, 1, 0], sizes = [16, 16, 4], strides = [1, 1, 1]} : vector<18x18x4xf32> to vector<16x16x4xf32>
    %22 = vector.shape_cast %21 : vector<16x16x4xf32> to vector<256x4xf32>
    %23 = vector.extract_strided_slice %6 {offsets = [2, 2, 0], sizes = [16, 16, 4], strides = [1, 1, 1]} : vector<18x18x4xf32> to vector<16x16x4xf32>
    %24 = vector.shape_cast %23 : vector<16x16x4xf32> to vector<256x4xf32>
    %25 = tpu.concatenate %8, %10, %12, %14, %16, %18, %20, %22, %24 in 1 : vector<256x4xf32>, vector<256x4xf32>, vector<256x4xf32>, vector<256x4xf32>, vector<256x4xf32>, vector<256x4xf32>, vector<256x4xf32>, vector<256x4xf32>, vector<256x4xf32> -> vector<256x36xf32>
    %26 = arith.truncf %25 : vector<256x36xf32> to vector<256x36xbf16>
    %c0_11 = arith.constant 0 : index
    %c0_12 = arith.constant 0 : index
    %27 = vector.load %arg2[%c0_11, %c0_12] : memref<8x36xbf16, #tpu.memory_space<vmem>>, vector<8x36xbf16>
    %cst_13 = arith.constant dense<0.000000e+00> : vector<8x256xf32>
    %28 = tpu.matmul %27, %26, %cst_13 {dimension_numbers = #tpu.dot_dimension_numbers<[1], [1], [0], [0], [0, 0, 1, 0], [], []>} : vector<8x36xbf16>, vector<256x36xbf16>, vector<8x256xf32> -> vector<8x256xf32>
    %c0_14 = arith.constant 0 : index
    %c0_15 = arith.constant 0 : index
    %29 = vector.load %arg3[%c0_14, %c0_15] : memref<8x1xf32, #tpu.memory_space<vmem>>, vector<8x1xf32>
    %30 = vector.broadcast %29 : vector<8x1xf32> to vector<8x256xf32>
    %31 = arith.addf %28, %30 : vector<8x256xf32>
    %cst_16 = arith.constant 0.000000e+00 : f32
    %32 = vector.broadcast %cst_16 : f32 to vector<8x256xf32>
    %33 = arith.cmpf ogt, %31, %32 : vector<8x256xf32>
    %34 = math.exp %31 : vector<8x256xf32>
    %cst_17 = arith.constant 1.000000e+00 : f32
    %35 = vector.broadcast %cst_17 : f32 to vector<8x256xf32>
    %36 = arith.subf %34, %35 : vector<8x256xf32>
    %37 = arith.select %33, %31, %36 : vector<8x256xi1>, vector<8x256xf32>
    %38 = vector.shape_cast %37 : vector<8x256xf32> to vector<1x8x256xf32>
    %c0_18 = arith.constant 0 : index
    %c0_19 = arith.constant 0 : index
    %c0_20 = arith.constant 0 : index
    %39 = vector.load %arg4[%c0_18, %c0_19, %c0_20] : memref<1x8x256xf32, #tpu.memory_space<vmem>>, vector<1x8x256xf32>
    tpu.vector_store %arg4[%c0_18, %c0_19, %c0_20], %38 {strides = array<i32>} : memref<1x8x256xf32, #tpu.memory_space<vmem>>, vector<1x8x256xf32>,
    return
  }
  func.func @transform_0(%arg0: i32) -> (i32, i32, i32, i32) {
    %c0_i32 = arith.constant 0 : i32
    %c0_i32_0 = arith.constant 0 : i32
    %c0_i32_1 = arith.constant 0 : i32
    %c0_i32_2 = arith.constant 0 : i32
    return %arg0, %c0_i32, %c0_i32_0, %c0_i32_1 : i32, i32, i32, i32
  }
  func.func @transform_1(%arg0: i32) -> (i32, i32) {
    %c0_i32 = arith.constant 0 : i32
    %c0_i32_0 = arith.constant 0 : i32
    %c0_i32_1 = arith.constant 0 : i32
    return %c0_i32, %c0_i32_0 : i32, i32
  }
  func.func @transform_2(%arg0: i32) -> (i32, i32) {
    %c0_i32 = arith.constant 0 : i32
    %c0_i32_0 = arith.constant 0 : i32
    %c0_i32_1 = arith.constant 0 : i32
    return %c0_i32, %c0_i32_0 : i32, i32
  }
  func.func @transform_3(%arg0: i32) -> (i32, i32, i32) {
    %c0_i32 = arith.constant 0 : i32
    %c0_i32_0 = arith.constant 0 : i32
    %c0_i32_1 = arith.constant 0 : i32
    return %arg0, %c0_i32, %c0_i32_0 : i32, i32, i32
  }
}

</mosaic_0001>

<llo_original>
// kernel: conv_same_elu.1
$region0: #{conv_same_elu.1}
  #allocation0 [shape = 'u32[]', space=smem, size = 0x4, offset = 0x4, fixed_abs, tag = 'smem constant byte address 0x4 - core index']
  #allocation1 [shape = 'u32[144,128]{1,0:T(1,128)}', space=vmem, size = 0x12000, scoped, tag = 'internal scratch']
  #allocation2 [shape = 'f32[18,18,4]{2,1,0:T(8,128)}', space=vmem, size = 0x36000, scoped, tag = 'scratch operand']
  %s0 = inlined_call_operand.vmem [shape: bf16[2,16,16,4], index: 0, kind: input, shape index: {}]
  %s1 = inlined_call_operand.vmem [shape: bf16[8,36], index: 1, kind: input, shape index: {}]
  %s2 = inlined_call_operand.vmem [shape: f32[8,1], index: 2, kind: input, shape index: {}]
  %s3 = inlined_call_operand.vmem [shape: f32[2,8,256], index: 3, kind: output, shape index: {}]
  %s4 = sld [smem:[#allocation0]]
  $region45: #{conv_same_elu.1} parent=0
    _
  %s6 = ssub.s32 1, %s4
  %s7 = scalar_select 0, %s6, %s4
  loop: start=0, step=1, limit=4
  $region2: #{conv_same_elu.1} parent=0 // loop_pre_header
    _
  $region3: #{conv_same_elu.1} parent=0 // loop_header
    %s9 = sphi 0, %s13
    %p10 = scmp.ge.s32.totalorder %s9, 4
    %s19 = sphi 0, %s21
    %s22 = sphi 0, %s19
    %s23 = sphi 0, %s22
    %s39 = sphi 0, %s23
    %s43 = sphi 0, %s43
    %s45 = sphi 0, %s43
    %s46 = sphi 0, %s45
    %s60 = sphi 0, %s46
    %s64 = sphi 0, %s64
    %s66 = sphi 0, %s64
    %s67 = sphi 0, %s66
    %s81 = sphi 0, %s67
    %s87 = sphi 0, %s89
    %s90 = sphi 0, %s87
    %s91 = sphi 0, %s90
    %s107 = sphi 0, %s91
  $region4: #{conv_same_elu.1} parent=0 // loop_header_branch
    %12 = sbr.rel (%p10) target = $region8
  $region5: #{conv_same_elu.1} parent=0 // loop_body
    %s14 = ssub.s32 %s9, 1
    %s15 = ssub.s32 %s9, 2
    %s16 = sadd.s32 %s9, 1
    %s17 = ssub.s32 %s9, %s16
    %p18 = scmp.eq.s32.totalorder %s17, 0
    %s20 = sadd.s32 %s19, 1
    %s21 = scalar_select %p18, %s19, %s20
    %p24 = pneg %p18
    %p25 = scmp.eq.s32.totalorder %s9, 1
    %p26 = por %p24, %p25
    %p27 = scmp.ne.s32.totalorder %s19, %s22
    %p28 = scmp.eq.s32.totalorder %s9, 0
    %p29 = por %p27, %p28
    %p30 = scmp.ne.s32.totalorder %s19, %s22
    %p31 = scmp.eq.s32.totalorder %s14, 1
    %p32 = por %p30, %p31
    %p33 = scmp.ne.s32.totalorder %s22, %s23
    %p34 = scmp.eq.s32.totalorder %s14, 0
    %p35 = por %p33, %p34
    %p36 = scmp.ne.s32.totalorder %s22, %s23
    %p37 = scmp.eq.s32.totalorder %s15, 1
    %p38 = por %p36, %p37
    %p40 = scmp.ne.s32.totalorder %s23, %s39
    %p41 = scmp.eq.s32.totalorder %s15, 0
    %p42 = por %p40, %p41
    %s44 = sadd.s32 %s43, 1
    %p47 = scmp.eq.s32.totalorder %s9, 1
    %p48 = scmp.ne.s32.totalorder %s43, %s45
    %p49 = scmp.eq.s32.totalorder %s9, 0
    %p50 = por %p48, %p49
    %p51 = scmp.ne.s32.totalorder %s43, %s45
    %p52 = scmp.eq.s32.totalorder %s14, 1
    %p53 = por %p51, %p52
    %p54 = scmp.ne.s32.totalorder %s45, %s46
    %p55 = scmp.eq.s32.totalorder %s14, 0
    %p56 = por %p54, %p55
    %p57 = scmp.ne.s32.totalorder %s45, %s46
    %p58 = scmp.eq.s32.totalorder %s15, 1
    %p59 = por %p57, %p58
    %p61 = scmp.ne.s32.totalorder %s46, %s60
    %p62 = scmp.eq.s32.totalorder %s15, 0
    %p63 = por %p61, %p62
    %s65 = sadd.s32 %s64, 1
    %p68 = scmp.eq.s32.totalorder %s9, 1
    %p69 = scmp.ne.s32.totalorder %s64, %s66
    %p70 = scmp.eq.s32.totalorder %s9, 0
    %p71 = por %p69, %p70
    %p72 = scmp.ne.s32.totalorder %s64, %s66
    %p73 = scmp.eq.s32.totalorder %s14, 1
    %p74 = por %p72, %p73
    %p75 = scmp.ne.s32.totalorder %s66, %s67
    %p76 = scmp.eq.s32.totalorder %s14, 0
    %p77 = por %p75, %p76
    %p78 = scmp.ne.s32.totalorder %s66, %s67
    %p79 = scmp.eq.s32.totalorder %s15, 1
    %p80 = por %p78, %p79
    %p82 = scmp.ne.s32.totalorder %s67, %s81
    %p83 = scmp.eq.s32.totalorder %s15, 0
    %p84 = por %p82, %p83
    %s85 = ssub.s32 %s9, %s16
    %p86 = scmp.eq.s32.totalorder %s85, 0
    %s88 = sadd.s32 %s87, 1
    %s89 = scalar_select %p86, %s87, %s88
    %p92 = pneg %p86
    %p93 = scmp.eq.s32.totalorder %s9, 1
    %p94 = por %p92, %p93
    %p95 = scmp.ne.s32.totalorder %s87, %s90
    %p96 = scmp.eq.s32.totalorder %s9, 0
    %p97 = por %p95, %p96
    %p98 = scmp.ne.s32.totalorder %s87, %s90
    %p99 = scmp.eq.s32.totalorder %s14, 1
    %p100 = por %p98, %p99
    %p101 = scmp.ne.s32.totalorder %s90, %s91
    %p102 = scmp.eq.s32.totalorder %s14, 0
    %p103 = por %p101, %p102
    %p104 = scmp.ne.s32.totalorder %s90, %s91
    %p105 = scmp.eq.s32.totalorder %s15, 1
    %p106 = por %p104, %p105
    %p108 = scmp.ne.s32.totalorder %s91, %s107
    %p109 = scmp.eq.s32.totalorder %s15, 0
    %p110 = por %p108, %p109
    %p111 = scmp.le.s32.totalorder 1, %s9
    %p112 = scmp.lt.s32.totalorder %s9, 3
    %p113 = pnand %p111, %p112
    %p114 = pneg %p113
    // Predicated region
    $region9: #{conv_same_elu.1} parent=5 // pred_check
      _
    $region10: #{conv_same_elu.1} parent=5 // pred_check_branch
      %116 = sbr.rel (%p113) target = $region12
    $region11: #{conv_same_elu.1} parent=5 // pred_region
      %s117 = ssub.s32 %s9, 1
      // Predicated region
      $region13: #{conv_same_elu.1} parent=11 // pred_check
        %p118 = pneg %p56
      $region14: #{conv_same_elu.1} parent=11 // pred_check_branch
        %120 = sbr.rel (%p118) target = $region16
      $region15: #{conv_same_elu.1} parent=11 // pred_region
        _
      $region16: #{conv_same_elu.1} parent=11 // pred_fallthru
        _
      // Predicated region
      $region17: #{conv_same_elu.1} parent=11 // pred_check
        %p121 = pneg %p77
      $region18: #{conv_same_elu.1} parent=11 // pred_check_branch
        %123 = sbr.rel (%p121) target = $region20
      $region19: #{conv_same_elu.1} parent=11 // pred_region
        _
      $region20: #{conv_same_elu.1} parent=11 // pred_fallthru
        _
    $region12: #{conv_same_elu.1} parent=5 // pred_fallthru
      _
    %p124 = scmp.lt.s32.totalorder %s9, 2
    // Predicated region
    $region21: #{conv_same_elu.1} parent=5 // pred_check
      %p125 = pneg %p124
    $region22: #{conv_same_elu.1} parent=5 // pred_check_branch
      %127 = sbr.rel (%p125) target = $region24
    $region23: #{conv_same_elu.1} parent=5 // pred_region
      // Predicated region
      $region25: #{conv_same_elu.1} parent=23 // pred_check
        %p128 = pneg %p29
      $region26: #{conv_same_elu.1} parent=23 // pred_check_branch
        %130 = sbr.rel (%p128) target = $region28
      $region27: #{conv_same_elu.1} parent=23 // pred_region
        %p131 = scmp.lt.s32.totalorder %s9, 1
        %s132 = scalar_select %p131, %s9, 1
        %s133 = smul.addr %s132, 32
        %s134 = smul.addr %s133, 4
        %s135 = scalar_lea.vmem %s0, %s134
      $region28: #{conv_same_elu.1} parent=23 // pred_fallthru
        _
    $region24: #{conv_same_elu.1} parent=5 // pred_fallthru
      _
    %p136 = scmp.le.s32.totalorder 1, %s9
    %p137 = scmp.lt.s32.totalorder %s9, 3
    %p138 = pnand %p136, %p137
    %p139 = pneg %p138
    // Predicated region
    $region29: #{conv_same_elu.1} parent=5 // pred_check
      _
    $region30: #{conv_same_elu.1} parent=5 // pred_check_branch
      %141 = sbr.rel (%p138) target = $region32
    $region31: #{conv_same_elu.1} parent=5 // pred_region
      %s142 = ssub.s32 %s9, 1
      %p143 = scmp.lt.s32.totalorder %s14, 1
      %s144 = scalar_select %p143, %s14, 1
      %s145 = smul.addr %s144, 32
      %s146 = smul.addr %s145, 4
      %s147 = scalar_lea.vmem %s0, %s146
      %p148 = pneg %p35
      %p149 = pneg %p32
      %p150 = pneg %p56
      %p151 = pneg %p53
      %p152 = pneg %p77
      %p153 = pneg %p74
      %p154 = pneg %p103
      %p155 = pneg %p100
      %p156 = scmp.lt.s32.totalorder %s14, 1
      %s157 = scalar_select %p156, %s14, 1
      %s158 = smul.addr %s157, 2
      %s159 = smul.addr %s158, 8
      %s160 = scalar_lea.vmem %s3, %s159
      %p161 = scmp.lt.s32.totalorder %s14, 1
      %s162 = scalar_select %p161, %s14, 1
      %s163 = smul.addr %s162, 32
      %s164 = smul.addr %s163, 4
      %s165 = scalar_lea.vmem %s0, %s164
      %p166 = scmp.lt.s32.totalorder %s14, 1
      %s167 = scalar_select %p166, %s14, 1
      %s168 = smul.addr %s167, 2
      %s169 = smul.addr %s168, 8
      %s170 = scalar_lea.vmem %s3, %s169
      %vm172 = vcmask 31744
      %173 = vst.msk [vmem:[#allocation2] sm:$0xff] %vm172, 0.0
      %174 = vst.msk [vmem:[#allocation2 + $0x8] sm:$0xff] %vm172, 0.0
      %vm175 = vcmask 25600
      %176 = vst.msk [vmem:[#allocation2 + $0x10] sm:$0x3] %vm175, 0.0
      %177 = vst.msk [vmem:[#allocation2 + $0x18] sm:$0xff] %vm172, 0.0
      %178 = vst.msk [vmem:[#allocation2 + $0x20] sm:$0xff] %vm172, 0.0
      %179 = vst.msk [vmem:[#allocation2 + $0x28] sm:$0x3] %vm175, 0.0
      %180 = vst.msk [vmem:[#allocation2 + $0x30] sm:$0xff] %vm172, 0.0
      %181 = vst.msk [vmem:[#allocation2 + $0x38] sm:$0xff] %vm172, 0.0
      %182 = vst.msk [vmem:[#allocation2 + $0x40] sm:$0x3] %vm175, 0.0
      %183 = vst.msk [vmem:[#allocation2 + $0x48] sm:$0xff] %vm172, 0.0
      %184 = vst.msk [vmem:[#allocation2 + $0x50] sm:$0xff] %vm172, 0.0
      %185 = vst.msk [vmem:[#allocation2 + $0x58] sm:$0x3] %vm175, 0.0
      %186 = vst.msk [vmem:[#allocation2 + $0x60] sm:$0xff] %vm172, 0.0
      %187 = vst.msk [vmem:[#allocation2 + $0x68] sm:$0xff] %vm172, 0.0
      %188 = vst.msk [vmem:[#allocation2 + $0x70] sm:$0x3] %vm175, 0.0
      %189 = vst.msk [vmem:[#allocation2 + $0x78] sm:$0xff] %vm172, 0.0
      %190 = vst.msk [vmem:[#allocation2 + $0x80] sm:$0xff] %vm172, 0.0
      %191 = vst.msk [vmem:[#allocation2 + $0x88] sm:$0x3] %vm175, 0.0
      %192 = vst.msk [vmem:[#allocation2 + $0x90] sm:$0xff] %vm172, 0.0
      %193 = vst.msk [vmem:[#allocation2 + $0x98] sm:$0xff] %vm172, 0.0
      %194 = vst.msk [vmem:[#allocation2 + $0xa0] sm:$0x3] %vm175, 0.0
      %195 = vst.msk [vmem:[#allocation2 + $0xa8] sm:$0xff] %vm172, 0.0
      %196 = vst.msk [vmem:[#allocation2 + $0xb0] sm:$0xff] %vm172, 0.0
      %197 = vst.msk [vmem:[#allocation2 + $0xb8] sm:$0x3] %vm175, 0.0
      %198 = vst.msk [vmem:[#allocation2 + $0xc0] sm:$0xff] %vm172, 0.0
      %199 = vst.msk [vmem:[#allocation2 + $0xc8] sm:$0xff] %vm172, 0.0
      %200 = vst.msk [vmem:[#allocation2 + $0xd0] sm:$0x3] %vm175, 0.0
      %201 = vst.msk [vmem:[#allocation2 + $0xd8] sm:$0xff] %vm172, 0.0
      %202 = vst.msk [vmem:[#allocation2 + $0xe0] sm:$0xff] %vm172, 0.0
      %203 = vst.msk [vmem:[#allocation2 + $0xe8] sm:$0x3] %vm175, 0.0
      %204 = vst.msk [vmem:[#allocation2 + $0xf0] sm:$0xff] %vm172, 0.0
      %205 = vst.msk [vmem:[#allocation2 + $0xf8] sm:$0xff] %vm172, 0.0
      %206 = vst.msk [vmem:[#allocation2 + $0x100] sm:$0x3] %vm175, 0.0
      %207 = vst.msk [vmem:[#allocation2 + $0x108] sm:$0xff] %vm172, 0.0
      %208 = vst.msk [vmem:[#allocation2 + $0x110] sm:$0xff] %vm172, 0.0
      %209 = vst.msk [vmem:[#allocation2 + $0x118] sm:$0x3] %vm175, 0.0
      %210 = vst.msk [vmem:[#allocation2 + $0x120] sm:$0xff] %vm172, 0.0
      %211 = vst.msk [vmem:[#allocation2 + $0x128] sm:$0xff] %vm172, 0.0
      %212 = vst.msk [vmem:[#allocation2 + $0x130] sm:$0x3] %vm175, 0.0
      %213 = vst.msk [vmem:[#allocation2 + $0x138] sm:$0xff] %vm172, 0.0
      %214 = vst.msk [vmem:[#allocation2 + $0x140] sm:$0xff] %vm172, 0.0
      %215 = vst.msk [vmem:[#allocation2 + $0x148] sm:$0x3] %vm175, 0.0
      %216 = vst.msk [vmem:[#allocation2 + $0x150] sm:$0xff] %vm172, 0.0
      %217 = vst.msk [vmem:[#allocation2 + $0x158] sm:$0xff] %vm172, 0.0
      %218 = vst.msk [vmem:[#allocation2 + $0x160] sm:$0x3] %vm175, 0.0
      %219 = vst.msk [vmem:[#allocation2 + $0x168] sm:$0xff] %vm172, 0.0
      %220 = vst.msk [vmem:[#allocation2 + $0x170] sm:$0xff] %vm172, 0.0
      %221 = vst.msk [vmem:[#allocation2 + $0x178] sm:$0x3] %vm175, 0.0
      %222 = vst.msk [vmem:[#allocation2 + $0x180] sm:$0xff] %vm172, 0.0
      %223 = vst.msk [vmem:[#allocation2 + $0x188] sm:$0xff] %vm172, 0.0
      %224 = vst.msk [vmem:[#allocation2 + $0x190] sm:$0x3] %vm175, 0.0
      %225 = vst.msk [vmem:[#allocation2 + $0x198] sm:$0xff] %vm172, 0.0
      %226 = vst.msk [vmem:[#allocation2 + $0x1a0] sm:$0xff] %vm172, 0.0
      %227 = vst.msk [vmem:[#allocation2 + $0x1a8] sm:$0x3] %vm175, 0.0
      %v228 = vld [vmem:[%s165] sm:$0xf]
      %v229 = vld [vmem:[%s165 + $0x4] sm:$0xf]
      %v230 = vld [vmem:[%s165 + $0x8] sm:$0xf]
      %v231 = vld [vmem:[%s165 + $0xc] sm:$0xf]
      %v232 = vld [vmem:[%s165 + $0x10] sm:$0xf]
      %v233 = vld [vmem:[%s165 + $0x14] sm:$0xf]
      %v234 = vld [vmem:[%s165 + $0x18] sm:$0xf]
      %v235 = vld [vmem:[%s165 + $0x1c] sm:$0xf]
      %v236 = vld [vmem:[%s165 + $0x20] sm:$0xf]
      %v237 = vld [vmem:[%s165 + $0x24] sm:$0xf]
      %v238 = vld [vmem:[%s165 + $0x28] sm:$0xf]
      %v239 = vld [vmem:[%s165 + $0x2c] sm:$0xf]
      %v240 = vld [vmem:[%s165 + $0x30] sm:$0xf]
      %v241 = vld [vmem:[%s165 + $0x34] sm:$0xf]
      %v242 = vld [vmem:[%s165 + $0x38] sm:$0xf]
      %v243 = vld [vmem:[%s165 + $0x3c] sm:$0xf]
      %v244 = vld [vmem:[%s165 + $0x40] sm:$0xf]
      %v245 = vld [vmem:[%s165 + $0x44] sm:$0xf]
      %v246 = vld [vmem:[%s165 + $0x48] sm:$0xf]
      %v247 = vld [vmem:[%s165 + $0x4c] sm:$0xf]
      %v248 = vld [vmem:[%s165 + $0x50] sm:$0xf]
      %v249 = vld [vmem:[%s165 + $0x54] sm:$0xf]
      %v250 = vld [vmem:[%s165 + $0x58] sm:$0xf]
      %v251 = vld [vmem:[%s165 + $0x5c] sm:$0xf]
      %v252 = vld [vmem:[%s165 + $0x60] sm:$0xf]
      %v253 = vld [vmem:[%s165 + $0x64] sm:$0xf]
      %v254 = vld [vmem:[%s165 + $0x68] sm:$0xf]
      %v255 = vld [vmem:[%s165 + $0x6c] sm:$0xf]
      %v256 = vld [vmem:[%s165 + $0x70] sm:$0xf]
      %v257 = vld [vmem:[%s165 + $0x74] sm:$0xf]
      %v258 = vld [vmem:[%s165 + $0x78] sm:$0xf]
      %v259 = vld [vmem:[%s165 + $0x7c] sm:$0xf]
      %v260 = vunpack.c.l.bf16 %v228
      %v261 = vunpack.c.l.bf16 %v229
      %v262 = vunpack.c.l.bf16 %v230
      %v263 = vunpack.c.l.bf16 %v231
      %v264 = vunpack.c.l.bf16 %v232
      %v265 = vunpack.c.l.bf16 %v233
      %v266 = vunpack.c.l.bf16 %v234
      %v267 = vunpack.c.l.bf16 %v235
      %v268 = vunpack.c.l.bf16 %v236
      %v269 = vunpack.c.l.bf16 %v237
      %v270 = vunpack.c.l.bf16 %v238
      %v271 = vunpack.c.l.bf16 %v239
      %v272 = vunpack.c.l.bf16 %v240
      %v273 = vunpack.c.l.bf16 %v241
      %v274 = vunpack.c.l.bf16 %v242
      %v275 = vunpack.c.l.bf16 %v243
      %v276 = vunpack.c.l.bf16 %v244
      %v277 = vunpack.c.l.bf16 %v245
      %v278 = vunpack.c.l.bf16 %v246
      %v279 = vunpack.c.l.bf16 %v247
      %v280 = vunpack.c.l.bf16 %v248
      %v281 = vunpack.c.l.bf16 %v249
      %v282 = vunpack.c.l.bf16 %v250
      %v283 = vunpack.c.l.bf16 %v251
      %v284 = vunpack.c.l.bf16 %v252
      %v285 = vunpack.c.l.bf16 %v253
      %v286 = vunpack.c.l.bf16 %v254
      %v287 = vunpack.c.l.bf16 %v255
      %v288 = vunpack.c.l.bf16 %v256
      %v289 = vunpack.c.l.bf16 %v257
      %v290 = vunpack.c.l.bf16 %v258
      %v291 = vunpack.c.l.bf16 %v259
      %s292 = scalar_lea.vmem [#allocation2], 24
      %293 = vst.msk [vmem:[%s292 + $0x1] sm:$0xff] %vm172, %v260
      %294 = vst.msk [vmem:[%s292 + $0x9] sm:$0xff] %vm172, %v261
      %295 = vst.msk [vmem:[%s292 + $0x19] sm:$0xff] %vm172, %v262
      %296 = vst.msk [vmem:[%s292 + $0x21] sm:$0xff] %vm172, %v263
      %297 = vst.msk [vmem:[%s292 + $0x31] sm:$0xff] %vm172, %v264
      %298 = vst.msk [vmem:[%s292 + $0x39] sm:$0xff] %vm172, %v265
      %299 = vst.msk [vmem:[%s292 + $0x49] sm:$0xff] %vm172, %v266
      %300 = vst.msk [vmem:[%s292 + $0x51] sm:$0xff] %vm172, %v267
      %301 = vst.msk [vmem:[%s292 + $0x61] sm:$0xff] %vm172, %v268
      %302 = vst.msk [vmem:[%s292 + $0x69] sm:$0xff] %vm172, %v269
      %303 = vst.msk [vmem:[%s292 + $0x79] sm:$0xff] %vm172, %v270
      %304 = vst.msk [vmem:[%s292 + $0x81] sm:$0xff] %vm172, %v271
      %305 = vst.msk [vmem:[%s292 + $0x91] sm:$0xff] %vm172, %v272
      %306 = vst.msk [vmem:[%s292 + $0x99] sm:$0xff] %vm172, %v273
      %307 = vst.msk [vmem:[%s292 + $0xa9] sm:$0xff] %vm172, %v274
      %308 = vst.msk [vmem:[%s292 + $0xb1] sm:$0xff] %vm172, %v275
      %309 = vst.msk [vmem:[%s292 + $0xc1] sm:$0xff] %vm172, %v276
      %310 = vst.msk [vmem:[%s292 + $0xc9] sm:$0xff] %vm172, %v277
      %311 = vst.msk [vmem:[%s292 + $0xd9] sm:$0xff] %vm172, %v278
      %312 = vst.msk [vmem:[%s292 + $0xe1] sm:$0xff] %vm172, %v279
      %313 = vst.msk [vmem:[%s292 + $0xf1] sm:$0xff] %vm172, %v280
      %314 = vst.msk [vmem:[%s292 + $0xf9] sm:$0xff] %vm172, %v281
      %315 = vst.msk [vmem:[%s292 + $0x109] sm:$0xff] %vm172, %v282
      %316 = vst.msk [vmem:[%s292 + $0x111] sm:$0xff] %vm172, %v283
      %317 = vst.msk [vmem:[%s292 + $0x121] sm:$0xff] %vm172, %v284
      %318 = vst.msk [vmem:[%s292 + $0x129] sm:$0xff] %vm172, %v285
      %319 = vst.msk [vmem:[%s292 + $0x139] sm:$0xff] %vm172, %v286
      %320 = vst.msk [vmem:[%s292 + $0x141] sm:$0xff] %vm172, %v287
      %321 = vst.msk [vmem:[%s292 + $0x151] sm:$0xff] %vm172, %v288
      %322 = vst.msk [vmem:[%s292 + $0x159] sm:$0xff] %vm172, %v289
      %323 = vst.msk [vmem:[%s292 + $0x169] sm:$0xff] %vm172, %v290
      %324 = vst.msk [vmem:[%s292 + $0x171] sm:$0xff] %vm172, %v291
      %v325 = vld [vmem:[#allocation2] sm:$0xff]
      %v326 = vld [vmem:[#allocation2 + $0x8] sm:$0xff]
      %v327 = vld [vmem:[#allocation2 + $0x10] sm:$0x3]
      %v328 = vld [vmem:[#allocation2 + $0x18] sm:$0xff]
      %v329 = vld [vmem:[#allocation2 + $0x20] sm:$0xff]
      %v330 = vld [vmem:[#allocation2 + $0x28] sm:$0x3]
      %v331 = vld [vmem:[#allocation2 + $0x30] sm:$0xff]
      %v332 = vld [vmem:[#allocation2 + $0x38] sm:$0xff]
      %v333 = vld [vmem:[#allocation2 + $0x40] sm:$0x3]
      %v334 = vld [vmem:[#allocation2 + $0x48] sm:$0xff]
      %v335 = vld [vmem:[#allocation2 + $0x50] sm:$0xff]
      %v336 = vld [vmem:[#allocation2 + $0x58] sm:$0x3]
      %v337 = vld [vmem:[#allocation2 + $0x60] sm:$0xff]
      %v338 = vld [vmem:[#allocation2 + $0x68] sm:$0xff]
      %v339 = vld [vmem:[#allocation2 + $0x70] sm:$0x3]
      %v340 = vld [vmem:[#allocation2 + $0x78] sm:$0xff]
      %v341 = vld [vmem:[#allocation2 + $0x80] sm:$0xff]
      %v342 = vld [vmem:[#allocation2 + $0x88] sm:$0x3]
      %v343 = vld [vmem:[#allocation2 + $0x90] sm:$0xff]
      %v344 = vld [vmem:[#allocation2 + $0x98] sm:$0xff]
      %v345 = vld [vmem:[#allocation2 + $0xa0] sm:$0x3]
      %v346 = vld [vmem:[#allocation2 + $0xa8] sm:$0xff]
      %v347 = vld [vmem:[#allocation2 + $0xb0] sm:$0xff]
      %v348 = vld [vmem:[#allocation2 + $0xb8] sm:$0x3]
      %v349 = vld [vmem:[#allocation2 + $0xc0] sm:$0xff]
      %v350 = vld [vmem:[#allocation2 + $0xc8] sm:$0xff]
      %v351 = vld [vmem:[#allocation2 + $0xd0] sm:$0x3]
      %v352 = vld [vmem:[#allocation2 + $0xd8] sm:$0xff]
      %v353 = vld [vmem:[#allocation2 + $0xe0] sm:$0xff]
      %v354 = vld [vmem:[#allocation2 + $0xe8] sm:$0x3]
      %v355 = vld [vmem:[#allocation2 + $0xf0] sm:$0xff]
      %v356 = vld [vmem:[#allocation2 + $0xf8] sm:$0xff]
      %v357 = vld [vmem:[#allocation2 + $0x100] sm:$0x3]
      %v358 = vld [vmem:[#allocation2 + $0x108] sm:$0xff]
      %v359 = vld [vmem:[#allocation2 + $0x110] sm:$0xff]
      %v360 = vld [vmem:[#allocation2 + $0x118] sm:$0x3]
      %v361 = vld [vmem:[#allocation2 + $0x120] sm:$0xff]
      %v362 = vld [vmem:[#allocation2 + $0x128] sm:$0xff]
      %v363 = vld [vmem:[#allocation2 + $0x130] sm:$0x3]
      %v364 = vld [vmem:[#allocation2 + $0x138] sm:$0xff]
      %v365 = vld [vmem:[#allocation2 + $0x140] sm:$0xff]
      %v366 = vld [vmem:[#allocation2 + $0x148] sm:$0x3]
      %v367 = vld [vmem:[#allocation2 + $0x150] sm:$0xff]
      %v368 = vld [vmem:[#allocation2 + $0x158] sm:$0xff]
      %v369 = vld [vmem:[#allocation2 + $0x160] sm:$0x3]
      %v370 = vld [vmem:[#allocation2 + $0x168] sm:$0xff]
      %v371 = vld [vmem:[#allocation2 + $0x170] sm:$0xff]
      %v372 = vld [vmem:[#allocation2 + $0x178] sm:$0x3]
      %v373 = vld [vmem:[#allocation2 + $0x180] sm:$0xff]
      %v374 = vld [vmem:[#allocation2 + $0x188] sm:$0xff]
      %v375 = vld [vmem:[#allocation2 + $0x190] sm:$0x3]
      %v376 = vld [vmem:[#allocation2 + $0x198] sm:$0xff]
      %v377 = vld [vmem:[#allocation2 + $0x1a0] sm:$0xff]
      %v378 = vld [vmem:[#allocation2 + $0x1a8] sm:$0x3]
      %vm427 = vcmask 1046528
      %v428 = vrot.slane %v325, 1
      %v429 = vrot.slane %v326, 1
      %v430 = vsel %vm427, %v428, %v429
      %v431 = vrot.slane %v327, 1
      %v432 = vsel %vm427, %v429, %v431
      %v433 = vrot.slane %v328, 1
      %v434 = vrot.slane %v329, 1
      %v435 = vsel %vm427, %v433, %v434
      %v436 = vrot.slane %v330, 1
      %v437 = vsel %vm427, %v434, %v436
      %v438 = vrot.slane %v331, 1
      %v439 = vrot.slane %v332, 1
      %v440 = vsel %vm427, %v438, %v439
      %v441 = vrot.slane %v333, 1
      %v442 = vsel %vm427, %v439, %v441
      %v443 = vrot.slane %v334, 1
      %v444 = vrot.slane %v335, 1
      %v445 = vsel %vm427, %v443, %v444
      %v446 = vrot.slane %v336, 1
      %v447 = vsel %vm427, %v444, %v446
      %v448 = vrot.slane %v337, 1
      %v449 = vrot.slane %v338, 1
      %v450 = vsel %vm427, %v448, %v449
      %v451 = vrot.slane %v339, 1
      %v452 = vsel %vm427, %v449, %v451
      %v453 = vrot.slane %v340, 1
      %v454 = vrot.slane %v341, 1
      %v455 = vsel %vm427, %v453, %v454
      %v456 = vrot.slane %v342, 1
      %v457 = vsel %vm427, %v454, %v456
      %v458 = vrot.slane %v343, 1
      %v459 = vrot.slane %v344, 1
      %v460 = vsel %vm427, %v458, %v459
      %v461 = vrot.slane %v345, 1
      %v462 = vsel %vm427, %v459, %v461
      %v463 = vrot.slane %v346, 1
      %v464 = vrot.slane %v347, 1
      %v465 = vsel %vm427, %v463, %v464
      %v466 = vrot.slane %v348, 1
      %v467 = vsel %vm427, %v464, %v466
      %v468 = vrot.slane %v349, 1
      %v469 = vrot.slane %v350, 1
      %v470 = vsel %vm427, %v468, %v469
      %v471 = vrot.slane %v351, 1
      %v472 = vsel %vm427, %v469, %v471
      %v473 = vrot.slane %v352, 1
      %v474 = vrot.slane %v353, 1
      %v475 = vsel %vm427, %v473, %v474
      %v476 = vrot.slane %v354, 1
      %v477 = vsel %vm427, %v474, %v476
      %v478 = vrot.slane %v355, 1
      %v479 = vrot.slane %v356, 1
      %v480 = vsel %vm427, %v478, %v479
      %v481 = vrot.slane %v357, 1
      %v482 = vsel %vm427, %v479, %v481
      %v483 = vrot.slane %v358, 1
      %v484 = vrot.slane %v359, 1
      %v485 = vsel %vm427, %v483, %v484
      %v486 = vrot.slane %v360, 1
      %v487 = vsel %vm427, %v484, %v486
      %v488 = vrot.slane %v361, 1
      %v489 = vrot.slane %v362, 1
      %v490 = vsel %vm427, %v488, %v489
      %v491 = vrot.slane %v363, 1
      %v492 = vsel %vm427, %v489, %v491
      %v493 = vrot.slane %v364, 1
      %v494 = vrot.slane %v365, 1
      %v495 = vsel %vm427, %v493, %v494
      %v496 = vrot.slane %v366, 1
      %v497 = vsel %vm427, %v494, %v496
      %v498 = vrot.slane %v367, 1
      %v499 = vrot.slane %v368, 1
      %v500 = vsel %vm427, %v498, %v499
      %v501 = vrot.slane %v369, 1
      %v502 = vsel %vm427, %v499, %v501
      %v503 = vrot.slane %v370, 1
      %v504 = vrot.slane %v371, 1
      %v505 = vsel %vm427, %v503, %v504
      %v506 = vrot.slane %v372, 1
      %v507 = vsel %vm427, %v504, %v506
      %vm508 = vcmask 1045504
      %v509 = vrot.slane %v325, 2
      %v510 = vrot.slane %v326, 2
      %v511 = vsel %vm508, %v509, %v510
      %v512 = vrot.slane %v327, 2
      %v513 = vsel %vm508, %v510, %v512
      %v514 = vrot.slane %v328, 2
      %v515 = vrot.slane %v329, 2
      %v516 = vsel %vm508, %v514, %v515
      %v517 = vrot.slane %v330, 2
      %v518 = vsel %vm508, %v515, %v517
      %v519 = vrot.slane %v331, 2
      %v520 = vrot.slane %v332, 2
      %v521 = vsel %vm508, %v519, %v520
      %v522 = vrot.slane %v333, 2
      %v523 = vsel %vm508, %v520, %v522
      %v524 = vrot.slane %v334, 2
      %v525 = vrot.slane %v335, 2
      %v526 = vsel %vm508, %v524, %v525
      %v527 = vrot.slane %v336, 2
      %v528 = vsel %vm508, %v525, %v527
      %v529 = vrot.slane %v337, 2
      %v530 = vrot.slane %v338, 2
      %v531 = vsel %vm508, %v529, %v530
      %v532 = vrot.slane %v339, 2
      %v533 = vsel %vm508, %v530, %v532
      %v534 = vrot.slane %v340, 2
      %v535 = vrot.slane %v341, 2
      %v536 = vsel %vm508, %v534, %v535
      %v537 = vrot.slane %v342, 2
      %v538 = vsel %vm508, %v535, %v537
      %v539 = vrot.slane %v343, 2
      %v540 = vrot.slane %v344, 2
      %v541 = vsel %vm508, %v539, %v540
      %v542 = vrot.slane %v345, 2
      %v543 = vsel %vm508, %v540, %v542
      %v544 = vrot.slane %v346, 2
      %v545 = vrot.slane %v347, 2
      %v546 = vsel %vm508, %v544, %v545
      %v547 = vrot.slane %v348, 2
      %v548 = vsel %vm508, %v545, %v547
      %v549 = vrot.slane %v349, 2
      %v550 = vrot.slane %v350, 2
      %v551 = vsel %vm508, %v549, %v550
      %v552 = vrot.slane %v351, 2
      %v553 = vsel %vm508, %v550, %v552
      %v554 = vrot.slane %v352, 2
      %v555 = vrot.slane %v353, 2
      %v556 = vsel %vm508, %v554, %v555
      %v557 = vrot.slane %v354, 2
      %v558 = vsel %vm508, %v555, %v557
      %v559 = vrot.slane %v355, 2
      %v560 = vrot.slane %v356, 2
      %v561 = vsel %vm508, %v559, %v560
      %v562 = vrot.slane %v357, 2
      %v563 = vsel %vm508, %v560, %v562
      %v564 = vrot.slane %v358, 2
      %v565 = vrot.slane %v359, 2
      %v566 = vsel %vm508, %v564, %v565
      %v567 = vrot.slane %v360, 2
      %v568 = vsel %vm508, %v565, %v567
      %v569 = vrot.slane %v361, 2
      %v570 = vrot.slane %v362, 2
      %v571 = vsel %vm508, %v569, %v570
      %v572 = vrot.slane %v363, 2
      %v573 = vsel %vm508, %v570, %v572
      %v574 = vrot.slane %v364, 2
      %v575 = vrot.slane %v365, 2
      %v576 = vsel %vm508, %v574, %v575
      %v577 = vrot.slane %v366, 2
      %v578 = vsel %vm508, %v575, %v577
      %v579 = vrot.slane %v367, 2
      %v580 = vrot.slane %v368, 2
      %v581 = vsel %vm508, %v579, %v580
      %v582 = vrot.slane %v369, 2
      %v583 = vsel %vm508, %v580, %v582
      %v584 = vrot.slane %v370, 2
      %v585 = vrot.slane %v371, 2
      %v586 = vsel %vm508, %v584, %v585
      %v587 = vrot.slane %v372, 2
      %v588 = vsel %vm508, %v585, %v587
      %v592 = vrot.slane %v373, 1
      %v593 = vrot.slane %v374, 1
      %v594 = vsel %vm427, %v592, %v593
      %v595 = vrot.slane %v375, 1
      %v596 = vsel %vm427, %v593, %v595
      %v597 = vrot.slane %v373, 2
      %v598 = vrot.slane %v374, 2
      %v599 = vsel %vm508, %v597, %v598
      %v600 = vrot.slane %v375, 2
      %v601 = vsel %vm508, %v598, %v600
      %v605 = vrot.slane %v376, 1
      %v606 = vrot.slane %v377, 1
      %v607 = vsel %vm427, %v605, %v606
      %v608 = vrot.slane %v378, 1
      %v609 = vsel %vm427, %v606, %v608
      %v610 = vrot.slane %v376, 2
      %v611 = vrot.slane %v377, 2
      %v612 = vsel %vm508, %v610, %v611
      %v613 = vrot.slane %v378, 2
      %v614 = vsel %vm508, %v611, %v613
      %615 = vrot.lane.b32.xlu0 %v430, 4
      %v616 = vpop.permute.xlu0 %615
      %617 = vrot.lane.b32.xlu0 %v432, 4
      %v618 = vpop.permute.xlu0 %617
      %619 = vrot.lane.b32.xlu0 %v435, 4
      %v620 = vpop.permute.xlu0 %619
      %621 = vrot.lane.b32.xlu0 %v437, 4
      %v622 = vpop.permute.xlu0 %621
      %623 = vrot.lane.b32.xlu0 %v440, 4
      %v624 = vpop.permute.xlu0 %623
      %625 = vrot.lane.b32.xlu0 %v442, 4
      %v626 = vpop.permute.xlu0 %625
      %627 = vrot.lane.b32.xlu0 %v445, 4
      %v628 = vpop.permute.xlu0 %627
      %629 = vrot.lane.b32.xlu0 %v447, 4
      %v630 = vpop.permute.xlu0 %629
      %631 = vrot.lane.b32.xlu0 %v450, 4
      %v632 = vpop.permute.xlu0 %631
      %633 = vrot.lane.b32.xlu0 %v452, 4
      %v634 = vpop.permute.xlu0 %633
      %635 = vrot.lane.b32.xlu0 %v455, 4
      %v636 = vpop.permute.xlu0 %635
      %637 = vrot.lane.b32.xlu0 %v457, 4
      %v638 = vpop.permute.xlu0 %637
      %639 = vrot.lane.b32.xlu0 %v460, 4
      %v640 = vpop.permute.xlu0 %639
      %641 = vrot.lane.b32.xlu0 %v462, 4
      %v642 = vpop.permute.xlu0 %641
      %643 = vrot.lane.b32.xlu0 %v465, 4
      %v644 = vpop.permute.xlu0 %643
      %645 = vrot.lane.b32.xlu0 %v467, 4
      %v646 = vpop.permute.xlu0 %645
      %647 = vrot.lane.b32.xlu0 %v470, 4
      %v648 = vpop.permute.xlu0 %647
      %649 = vrot.lane.b32.xlu0 %v472, 4
      %v650 = vpop.permute.xlu0 %649
      %651 = vrot.lane.b32.xlu0 %v475, 4
      %v652 = vpop.permute.xlu0 %651
      %653 = vrot.lane.b32.xlu0 %v477, 4
      %v654 = vpop.permute.xlu0 %653
      %655 = vrot.lane.b32.xlu0 %v480, 4
      %v656 = vpop.permute.xlu0 %655
      %657 = vrot.lane.b32.xlu0 %v482, 4
      %v658 = vpop.permute.xlu0 %657
      %659 = vrot.lane.b32.xlu0 %v485, 4
      %v660 = vpop.permute.xlu0 %659
      %661 = vrot.lane.b32.xlu0 %v487, 4
      %v662 = vpop.permute.xlu0 %661
      %663 = vrot.lane.b32.xlu0 %v490, 4
      %v664 = vpop.permute.xlu0 %663
      %665 = vrot.lane.b32.xlu0 %v492, 4
      %v666 = vpop.permute.xlu0 %665
      %667 = vrot.lane.b32.xlu0 %v495, 4
      %v668 = vpop.permute.xlu0 %667
      %669 = vrot.lane.b32.xlu0 %v497, 4
      %v670 = vpop.permute.xlu0 %669
      %671 = vrot.lane.b32.xlu0 %v500, 4
      %v672 = vpop.permute.xlu0 %671
      %673 = vrot.lane.b32.xlu0 %v502, 4
      %v674 = vpop.permute.xlu0 %673
      %675 = vrot.lane.b32.xlu0 %v505, 4
      %v676 = vpop.permute.xlu0 %675
      %677 = vrot.lane.b32.xlu0 %v507, 4
      %v678 = vpop.permute.xlu0 %677
      %711 = vrot.lane.b32.xlu0 %v511, 8
      %v712 = vpop.permute.xlu0 %711
      %713 = vrot.lane.b32.xlu0 %v513, 8
      %v714 = vpop.permute.xlu0 %713
      %715 = vrot.lane.b32.xlu0 %v516, 8
      %v716 = vpop.permute.xlu0 %715
      %717 = vrot.lane.b32.xlu0 %v518, 8
      %v718 = vpop.permute.xlu0 %717
      %719 = vrot.lane.b32.xlu0 %v521, 8
      %v720 = vpop.permute.xlu0 %719
      %721 = vrot.lane.b32.xlu0 %v523, 8
      %v722 = vpop.permute.xlu0 %721
      %723 = vrot.lane.b32.xlu0 %v526, 8
      %v724 = vpop.permute.xlu0 %723
      %725 = vrot.lane.b32.xlu0 %v528, 8
      %v726 = vpop.permute.xlu0 %725
      %727 = vrot.lane.b32.xlu0 %v531, 8
      %v728 = vpop.permute.xlu0 %727
      %729 = vrot.lane.b32.xlu0 %v533, 8
      %v730 = vpop.permute.xlu0 %729
      %731 = vrot.lane.b32.xlu0 %v536, 8
      %v732 = vpop.permute.xlu0 %731
      %733 = vrot.lane.b32.xlu0 %v538, 8
      %v734 = vpop.permute.xlu0 %733
      %735 = vrot.lane.b32.xlu0 %v541, 8
      %v736 = vpop.permute.xlu0 %735
      %737 = vrot.lane.b32.xlu0 %v543, 8
      %v738 = vpop.permute.xlu0 %737
      %739 = vrot.lane.b32.xlu0 %v546, 8
      %v740 = vpop.permute.xlu0 %739
      %741 = vrot.lane.b32.xlu0 %v548, 8
      %v742 = vpop.permute.xlu0 %741
      %743 = vrot.lane.b32.xlu0 %v551, 8
      %v744 = vpop.permute.xlu0 %743
      %745 = vrot.lane.b32.xlu0 %v553, 8
      %v746 = vpop.permute.xlu0 %745
      %747 = vrot.lane.b32.xlu0 %v556, 8
      %v748 = vpop.permute.xlu0 %747
      %749 = vrot.lane.b32.xlu0 %v558, 8
      %v750 = vpop.permute.xlu0 %749
      %751 = vrot.lane.b32.xlu0 %v561, 8
      %v752 = vpop.permute.xlu0 %751
      %753 = vrot.lane.b32.xlu0 %v563, 8
      %v754 = vpop.permute.xlu0 %753
      %755 = vrot.lane.b32.xlu0 %v566, 8
      %v756 = vpop.permute.xlu0 %755
      %757 = vrot.lane.b32.xlu0 %v568, 8
      %v758 = vpop.permute.xlu0 %757
      %759 = vrot.lane.b32.xlu0 %v571, 8
      %v760 = vpop.permute.xlu0 %759
      %761 = vrot.lane.b32.xlu0 %v573, 8
      %v762 = vpop.permute.xlu0 %761
      %763 = vrot.lane.b32.xlu0 %v576, 8
      %v764 = vpop.permute.xlu0 %763
      %765 = vrot.lane.b32.xlu0 %v578, 8
      %v766 = vpop.permute.xlu0 %765
      %767 = vrot.lane.b32.xlu0 %v581, 8
      %v768 = vpop.permute.xlu0 %767
      %769 = vrot.lane.b32.xlu0 %v583, 8
      %v770 = vpop.permute.xlu0 %769
      %771 = vrot.lane.b32.xlu0 %v586, 8
      %v772 = vpop.permute.xlu0 %771
      %773 = vrot.lane.b32.xlu0 %v588, 8
      %v774 = vpop.permute.xlu0 %773
      %807 = vrot.lane.b32.xlu0 %v328, 12
      %v808 = vpop.permute.xlu0 %807
      %809 = vrot.lane.b32.xlu0 %v329, 12
      %v810 = vpop.permute.xlu0 %809
      %811 = vrot.lane.b32.xlu0 %v331, 12
      %v812 = vpop.permute.xlu0 %811
      %813 = vrot.lane.b32.xlu0 %v332, 12
      %v814 = vpop.permute.xlu0 %813
      %815 = vrot.lane.b32.xlu0 %v334, 12
      %v816 = vpop.permute.xlu0 %815
      %817 = vrot.lane.b32.xlu0 %v335, 12
      %v818 = vpop.permute.xlu0 %817
      %819 = vrot.lane.b32.xlu0 %v337, 12
      %v820 = vpop.permute.xlu0 %819
      %821 = vrot.lane.b32.xlu0 %v338, 12
      %v822 = vpop.permute.xlu0 %821
      %823 = vrot.lane.b32.xlu0 %v340, 12
      %v824 = vpop.permute.xlu0 %823
      %825 = vrot.lane.b32.xlu0 %v341, 12
      %v826 = vpop.permute.xlu0 %825
      %827 = vrot.lane.b32.xlu0 %v343, 12
      %v828 = vpop.permute.xlu0 %827
      %829 = vrot.lane.b32.xlu0 %v344, 12
      %v830 = vpop.permute.xlu0 %829
      %831 = vrot.lane.b32.xlu0 %v346, 12
      %v832 = vpop.permute.xlu0 %831
      %833 = vrot.lane.b32.xlu0 %v347, 12
      %v834 = vpop.permute.xlu0 %833
      %835 = vrot.lane.b32.xlu0 %v349, 12
      %v836 = vpop.permute.xlu0 %835
      %837 = vrot.lane.b32.xlu0 %v350, 12
      %v838 = vpop.permute.xlu0 %837
      %839 = vrot.lane.b32.xlu0 %v352, 12
      %v840 = vpop.permute.xlu0 %839
      %841 = vrot.lane.b32.xlu0 %v353, 12
      %v842 = vpop.permute.xlu0 %841
      %843 = vrot.lane.b32.xlu0 %v355, 12
      %v844 = vpop.permute.xlu0 %843
      %845 = vrot.lane.b32.xlu0 %v356, 12
      %v846 = vpop.permute.xlu0 %845
      %847 = vrot.lane.b32.xlu0 %v358, 12
      %v848 = vpop.permute.xlu0 %847
      %849 = vrot.lane.b32.xlu0 %v359, 12
      %v850 = vpop.permute.xlu0 %849
      %851 = vrot.lane.b32.xlu0 %v361, 12
      %v852 = vpop.permute.xlu0 %851
      %853 = vrot.lane.b32.xlu0 %v362, 12
      %v854 = vpop.permute.xlu0 %853
      %855 = vrot.lane.b32.xlu0 %v364, 12
      %v856 = vpop.permute.xlu0 %855
      %857 = vrot.lane.b32.xlu0 %v365, 12
      %v858 = vpop.permute.xlu0 %857
      %859 = vrot.lane.b32.xlu0 %v367, 12
      %v860 = vpop.permute.xlu0 %859
      %861 = vrot.lane.b32.xlu0 %v368, 12
      %v862 = vpop.permute.xlu0 %861
      %863 = vrot.lane.b32.xlu0 %v370, 12
      %v864 = vpop.permute.xlu0 %863
      %865 = vrot.lane.b32.xlu0 %v371, 12
      %v866 = vpop.permute.xlu0 %865
      %867 = vrot.lane.b32.xlu0 %v373, 12
      %v868 = vpop.permute.xlu0 %867
      %869 = vrot.lane.b32.xlu0 %v374, 12
      %v870 = vpop.permute.xlu0 %869
      %903 = vrot.lane.b32.xlu0 %v435, 16
      %v904 = vpop.permute.xlu0 %903
      %905 = vrot.lane.b32.xlu0 %v437, 16
      %v906 = vpop.permute.xlu0 %905
      %907 = vrot.lane.b32.xlu0 %v440, 16
      %v908 = vpop.permute.xlu0 %907
      %909 = vrot.lane.b32.xlu0 %v442, 16
      %v910 = vpop.permute.xlu0 %909
      %911 = vrot.lane.b32.xlu0 %v445, 16
      %v912 = vpop.permute.xlu0 %911
      %913 = vrot.lane.b32.xlu0 %v447, 16
      %v914 = vpop.permute.xlu0 %913
      %915 = vrot.lane.b32.xlu0 %v450, 16
      %v916 = vpop.permute.xlu0 %915
      %917 = vrot.lane.b32.xlu0 %v452, 16
      %v918 = vpop.permute.xlu0 %917
      %919 = vrot.lane.b32.xlu0 %v455, 16
      %v920 = vpop.permute.xlu0 %919
      %921 = vrot.lane.b32.xlu0 %v457, 16
      %v922 = vpop.permute.xlu0 %921
      %923 = vrot.lane.b32.xlu0 %v460, 16
      %v924 = vpop.permute.xlu0 %923
      %925 = vrot.lane.b32.xlu0 %v462, 16
      %v926 = vpop.permute.xlu0 %925
      %927 = vrot.lane.b32.xlu0 %v465, 16
      %v928 = vpop.permute.xlu0 %927
      %929 = vrot.lane.b32.xlu0 %v467, 16
      %v930 = vpop.permute.xlu0 %929
      %931 = vrot.lane.b32.xlu0 %v470, 16
      %v932 = vpop.permute.xlu0 %931
      %933 = vrot.lane.b32.xlu0 %v472, 16
      %v934 = vpop.permute.xlu0 %933
      %935 = vrot.lane.b32.xlu0 %v475, 16
      %v936 = vpop.permute.xlu0 %935
      %937 = vrot.lane.b32.xlu0 %v477, 16
      %v938 = vpop.permute.xlu0 %937
      %939 = vrot.lane.b32.xlu0 %v480, 16
      %v940 = vpop.permute.xlu0 %939
      %941 = vrot.lane.b32.xlu0 %v482, 16
      %v942 = vpop.permute.xlu0 %941
      %943 = vrot.lane.b32.xlu0 %v485, 16
      %v944 = vpop.permute.xlu0 %943
      %945 = vrot.lane.b32.xlu0 %v487, 16
      %v946 = vpop.permute.xlu0 %945
      %947 = vrot.lane.b32.xlu0 %v490, 16
      %v948 = vpop.permute.xlu0 %947
      %949 = vrot.lane.b32.xlu0 %v492, 16
      %v950 = vpop.permute.xlu0 %949
      %951 = vrot.lane.b32.xlu0 %v495, 16
      %v952 = vpop.permute.xlu0 %951
      %953 = vrot.lane.b32.xlu0 %v497, 16
      %v954 = vpop.permute.xlu0 %953
      %955 = vrot.lane.b32.xlu0 %v500, 16
      %v956 = vpop.permute.xlu0 %955
      %957 = vrot.lane.b32.xlu0 %v502, 16
      %v958 = vpop.permute.xlu0 %957
      %959 = vrot.lane.b32.xlu0 %v505, 16
      %v960 = vpop.permute.xlu0 %959
      %961 = vrot.lane.b32.xlu0 %v507, 16
      %v962 = vpop.permute.xlu0 %961
      %963 = vrot.lane.b32.xlu0 %v594, 16
      %v964 = vpop.permute.xlu0 %963
      %965 = vrot.lane.b32.xlu0 %v596, 16
      %v966 = vpop.permute.xlu0 %965
      %999 = vrot.lane.b32.xlu0 %v516, 20
      %v1000 = vpop.permute.xlu0 %999
      %1001 = vrot.lane.b32.xlu0 %v518, 20
      %v1002 = vpop.permute.xlu0 %1001
      %1003 = vrot.lane.b32.xlu0 %v521, 20
      %v1004 = vpop.permute.xlu0 %1003
      %1005 = vrot.lane.b32.xlu0 %v523, 20
      %v1006 = vpop.permute.xlu0 %1005
      %1007 = vrot.lane.b32.xlu0 %v526, 20
      %v1008 = vpop.permute.xlu0 %1007
      %1009 = vrot.lane.b32.xlu0 %v528, 20
      %v1010 = vpop.permute.xlu0 %1009
      %1011 = vrot.lane.b32.xlu0 %v531, 20
      %v1012 = vpop.permute.xlu0 %1011
      %1013 = vrot.lane.b32.xlu0 %v533, 20
      %v1014 = vpop.permute.xlu0 %1013
      %1015 = vrot.lane.b32.xlu0 %v536, 20
      %v1016 = vpop.permute.xlu0 %1015
      %1017 = vrot.lane.b32.xlu0 %v538, 20
      %v1018 = vpop.permute.xlu0 %1017
      %1019 = vrot.lane.b32.xlu0 %v541, 20
      %v1020 = vpop.permute.xlu0 %1019
      %1021 = vrot.lane.b32.xlu0 %v543, 20
      %v1022 = vpop.permute.xlu0 %1021
      %1023 = vrot.lane.b32.xlu0 %v546, 20
      %v1024 = vpop.permute.xlu0 %1023
      %1025 = vrot.lane.b32.xlu0 %v548, 20
      %v1026 = vpop.permute.xlu0 %1025
      %1027 = vrot.lane.b32.xlu0 %v551, 20
      %v1028 = vpop.permute.xlu0 %1027
      %1029 = vrot.lane.b32.xlu0 %v553, 20
      %v1030 = vpop.permute.xlu0 %1029
      %1031 = vrot.lane.b32.xlu0 %v556, 20
      %v1032 = vpop.permute.xlu0 %1031
      %1033 = vrot.lane.b32.xlu0 %v558, 20
      %v1034 = vpop.permute.xlu0 %1033
      %1035 = vrot.lane.b32.xlu0 %v561, 20
      %v1036 = vpop.permute.xlu0 %1035
      %1037 = vrot.lane.b32.xlu0 %v563, 20
      %v1038 = vpop.permute.xlu0 %1037
      %1039 = vrot.lane.b32.xlu0 %v566, 20
      %v1040 = vpop.permute.xlu0 %1039
      %1041 = vrot.lane.b32.xlu0 %v568, 20
      %v1042 = vpop.permute.xlu0 %1041
      %1043 = vrot.lane.b32.xlu0 %v571, 20
      %v1044 = vpop.permute.xlu0 %1043
      %1045 = vrot.lane.b32.xlu0 %v573, 20
      %v1046 = vpop.permute.xlu0 %1045
      %1047 = vrot.lane.b32.xlu0 %v576, 20
      %v1048 = vpop.permute.xlu0 %1047
      %1049 = vrot.lane.b32.xlu0 %v578, 20
      %v1050 = vpop.permute.xlu0 %1049
      %1051 = vrot.lane.b32.xlu0 %v581, 20
      %v1052 = vpop.permute.xlu0 %1051
      %1053 = vrot.lane.b32.xlu0 %v583, 20
      %v1054 = vpop.permute.xlu0 %1053
      %1055 = vrot.lane.b32.xlu0 %v586, 20
      %v1056 = vpop.permute.xlu0 %1055
      %1057 = vrot.lane.b32.xlu0 %v588, 20
      %v1058 = vpop.permute.xlu0 %1057
      %1059 = vrot.lane.b32.xlu0 %v599, 20
      %v1060 = vpop.permute.xlu0 %1059
      %1061 = vrot.lane.b32.xlu0 %v601, 20
      %v1062 = vpop.permute.xlu0 %1061
      %1095 = vrot.lane.b32.xlu0 %v331, 24
      %v1096 = vpop.permute.xlu0 %1095
      %1097 = vrot.lane.b32.xlu0 %v332, 24
      %v1098 = vpop.permute.xlu0 %1097
      %1099 = vrot.lane.b32.xlu0 %v334, 24
      %v1100 = vpop.permute.xlu0 %1099
      %1101 = vrot.lane.b32.xlu0 %v335, 24
      %v1102 = vpop.permute.xlu0 %1101
      %1103 = vrot.lane.b32.xlu0 %v337, 24
      %v1104 = vpop.permute.xlu0 %1103
      %1105 = vrot.lane.b32.xlu0 %v338, 24
      %v1106 = vpop.permute.xlu0 %1105
      %1107 = vrot.lane.b32.xlu0 %v340, 24
      %v1108 = vpop.permute.xlu0 %1107
      %1109 = vrot.lane.b32.xlu0 %v341, 24
      %v1110 = vpop.permute.xlu0 %1109
      %1111 = vrot.lane.b32.xlu0 %v343, 24
      %v1112 = vpop.permute.xlu0 %1111
      %1113 = vrot.lane.b32.xlu0 %v344, 24
      %v1114 = vpop.permute.xlu0 %1113
      %1115 = vrot.lane.b32.xlu0 %v346, 24
      %v1116 = vpop.permute.xlu0 %1115
      %1117 = vrot.lane.b32.xlu0 %v347, 24
      %v1118 = vpop.permute.xlu0 %1117
      %1119 = vrot.lane.b32.xlu0 %v349, 24
      %v1120 = vpop.permute.xlu0 %1119
      %1121 = vrot.lane.b32.xlu0 %v350, 24
      %v1122 = vpop.permute.xlu0 %1121
      %1123 = vrot.lane.b32.xlu0 %v352, 24
      %v1124 = vpop.permute.xlu0 %1123
      %1125 = vrot.lane.b32.xlu0 %v353, 24
      %v1126 = vpop.permute.xlu0 %1125
      %1127 = vrot.lane.b32.xlu0 %v355, 24
      %v1128 = vpop.permute.xlu0 %1127
      %1129 = vrot.lane.b32.xlu0 %v356, 24
      %v1130 = vpop.permute.xlu0 %1129
      %1131 = vrot.lane.b32.xlu0 %v358, 24
      %v1132 = vpop.permute.xlu0 %1131
      %1133 = vrot.lane.b32.xlu0 %v359, 24
      %v1134 = vpop.permute.xlu0 %1133
      %1135 = vrot.lane.b32.xlu0 %v361, 24
      %v1136 = vpop.permute.xlu0 %1135
      %1137 = vrot.lane.b32.xlu0 %v362, 24
      %v1138 = vpop.permute.xlu0 %1137
      %1139 = vrot.lane.b32.xlu0 %v364, 24
      %v1140 = vpop.permute.xlu0 %1139
      %1141 = vrot.lane.b32.xlu0 %v365, 24
      %v1142 = vpop.permute.xlu0 %1141
      %1143 = vrot.lane.b32.xlu0 %v367, 24
      %v1144 = vpop.permute.xlu0 %1143
      %1145 = vrot.lane.b32.xlu0 %v368, 24
      %v1146 = vpop.permute.xlu0 %1145
      %1147 = vrot.lane.b32.xlu0 %v370, 24
      %v1148 = vpop.permute.xlu0 %1147
      %1149 = vrot.lane.b32.xlu0 %v371, 24
      %v1150 = vpop.permute.xlu0 %1149
      %1151 = vrot.lane.b32.xlu0 %v373, 24
      %v1152 = vpop.permute.xlu0 %1151
      %1153 = vrot.lane.b32.xlu0 %v374, 24
      %v1154 = vpop.permute.xlu0 %1153
      %1155 = vrot.lane.b32.xlu0 %v376, 24
      %v1156 = vpop.permute.xlu0 %1155
      %1157 = vrot.lane.b32.xlu0 %v377, 24
      %v1158 = vpop.permute.xlu0 %1157
      %1191 = vrot.lane.b32.xlu0 %v440, 28
      %v1192 = vpop.permute.xlu0 %1191
      %1193 = vrot.lane.b32.xlu0 %v442, 28
      %v1194 = vpop.permute.xlu0 %1193
      %1195 = vrot.lane.b32.xlu0 %v445, 28
      %v1196 = vpop.permute.xlu0 %1195
      %1197 = vrot.lane.b32.xlu0 %v447, 28
      %v1198 = vpop.permute.xlu0 %1197
      %1199 = vrot.lane.b32.xlu0 %v450, 28
      %v1200 = vpop.permute.xlu0 %1199
      %1201 = vrot.lane.b32.xlu0 %v452, 28
      %v1202 = vpop.permute.xlu0 %1201
      %1203 = vrot.lane.b32.xlu0 %v455, 28
      %v1204 = vpop.permute.xlu0 %1203
      %1205 = vrot.lane.b32.xlu0 %v457, 28
      %v1206 = vpop.permute.xlu0 %1205
      %1207 = vrot.lane.b32.xlu0 %v460, 28
      %v1208 = vpop.permute.xlu0 %1207
      %1209 = vrot.lane.b32.xlu0 %v462, 28
      %v1210 = vpop.permute.xlu0 %1209
      %1211 = vrot.lane.b32.xlu0 %v465, 28
      %v1212 = vpop.permute.xlu0 %1211
      %1213 = vrot.lane.b32.xlu0 %v467, 28
      %v1214 = vpop.permute.xlu0 %1213
      %1215 = vrot.lane.b32.xlu0 %v470, 28
      %v1216 = vpop.permute.xlu0 %1215
      %1217 = vrot.lane.b32.xlu0 %v472, 28
      %v1218 = vpop.permute.xlu0 %1217
      %1219 = vrot.lane.b32.xlu0 %v475, 28
      %v1220 = vpop.permute.xlu0 %1219
      %1221 = vrot.lane.b32.xlu0 %v477, 28
      %v1222 = vpop.permute.xlu0 %1221
      %1223 = vrot.lane.b32.xlu0 %v480, 28
      %v1224 = vpop.permute.xlu0 %1223
      %1225 = vrot.lane.b32.xlu0 %v482, 28
      %v1226 = vpop.permute.xlu0 %1225
      %1227 = vrot.lane.b32.xlu0 %v485, 28
      %v1228 = vpop.permute.xlu0 %1227
      %1229 = vrot.lane.b32.xlu0 %v487, 28
      %v1230 = vpop.permute.xlu0 %1229
      %1231 = vrot.lane.b32.xlu0 %v490, 28
      %v1232 = vpop.permute.xlu0 %1231
      %1233 = vrot.lane.b32.xlu0 %v492, 28
      %v1234 = vpop.permute.xlu0 %1233
      %1235 = vrot.lane.b32.xlu0 %v495, 28
      %v1236 = vpop.permute.xlu0 %1235
      %1237 = vrot.lane.b32.xlu0 %v497, 28
      %v1238 = vpop.permute.xlu0 %1237
      %1239 = vrot.lane.b32.xlu0 %v500, 28
      %v1240 = vpop.permute.xlu0 %1239
      %1241 = vrot.lane.b32.xlu0 %v502, 28
      %v1242 = vpop.permute.xlu0 %1241
      %1243 = vrot.lane.b32.xlu0 %v505, 28
      %v1244 = vpop.permute.xlu0 %1243
      %1245 = vrot.lane.b32.xlu0 %v507, 28
      %v1246 = vpop.permute.xlu0 %1245
      %1247 = vrot.lane.b32.xlu0 %v594, 28
      %v1248 = vpop.permute.xlu0 %1247
      %1249 = vrot.lane.b32.xlu0 %v596, 28
      %v1250 = vpop.permute.xlu0 %1249
      %1251 = vrot.lane.b32.xlu0 %v607, 28
      %v1252 = vpop.permute.xlu0 %1251
      %1253 = vrot.lane.b32.xlu0 %v609, 28
      %v1254 = vpop.permute.xlu0 %1253
      %1287 = vrot.lane.b32.xlu0 %v521, 32
      %v1288 = vpop.permute.xlu0 %1287
      %1289 = vrot.lane.b32.xlu0 %v523, 32
      %v1290 = vpop.permute.xlu0 %1289
      %1291 = vrot.lane.b32.xlu0 %v526, 32
      %v1292 = vpop.permute.xlu0 %1291
      %1293 = vrot.lane.b32.xlu0 %v528, 32
      %v1294 = vpop.permute.xlu0 %1293
      %1295 = vrot.lane.b32.xlu0 %v531, 32
      %v1296 = vpop.permute.xlu0 %1295
      %1297 = vrot.lane.b32.xlu0 %v533, 32
      %v1298 = vpop.permute.xlu0 %1297
      %1299 = vrot.lane.b32.xlu0 %v536, 32
      %v1300 = vpop.permute.xlu0 %1299
      %1301 = vrot.lane.b32.xlu0 %v538, 32
      %v1302 = vpop.permute.xlu0 %1301
      %1303 = vrot.lane.b32.xlu0 %v541, 32
      %v1304 = vpop.permute.xlu0 %1303
      %1305 = vrot.lane.b32.xlu0 %v543, 32
      %v1306 = vpop.permute.xlu0 %1305
      %1307 = vrot.lane.b32.xlu0 %v546, 32
      %v1308 = vpop.permute.xlu0 %1307
      %1309 = vrot.lane.b32.xlu0 %v548, 32
      %v1310 = vpop.permute.xlu0 %1309
      %1311 = vrot.lane.b32.xlu0 %v551, 32
      %v1312 = vpop.permute.xlu0 %1311
      %1313 = vrot.lane.b32.xlu0 %v553, 32
      %v1314 = vpop.permute.xlu0 %1313
      %1315 = vrot.lane.b32.xlu0 %v556, 32
      %v1316 = vpop.permute.xlu0 %1315
      %1317 = vrot.lane.b32.xlu0 %v558, 32
      %v1318 = vpop.permute.xlu0 %1317
      %1319 = vrot.lane.b32.xlu0 %v561, 32
      %v1320 = vpop.permute.xlu0 %1319
      %1321 = vrot.lane.b32.xlu0 %v563, 32
      %v1322 = vpop.permute.xlu0 %1321
      %1323 = vrot.lane.b32.xlu0 %v566, 32
      %v1324 = vpop.permute.xlu0 %1323
      %1325 = vrot.lane.b32.xlu0 %v568, 32
      %v1326 = vpop.permute.xlu0 %1325
      %1327 = vrot.lane.b32.xlu0 %v571, 32
      %v1328 = vpop.permute.xlu0 %1327
      %1329 = vrot.lane.b32.xlu0 %v573, 32
      %v1330 = vpop.permute.xlu0 %1329
      %1331 = vrot.lane.b32.xlu0 %v576, 32
      %v1332 = vpop.permute.xlu0 %1331
      %1333 = vrot.lane.b32.xlu0 %v578, 32
      %v1334 = vpop.permute.xlu0 %1333
      %1335 = vrot.lane.b32.xlu0 %v581, 32
      %v1336 = vpop.permute.xlu0 %1335
      %1337 = vrot.lane.b32.xlu0 %v583, 32
      %v1338 = vpop.permute.xlu0 %1337
      %1339 = vrot.lane.b32.xlu0 %v586, 32
      %v1340 = vpop.permute.xlu0 %1339
      %1341 = vrot.lane.b32.xlu0 %v588, 32
      %v1342 = vpop.permute.xlu0 %1341
      %1343 = vrot.lane.b32.xlu0 %v599, 32
      %v1344 = vpop.permute.xlu0 %1343
      %1345 = vrot.lane.b32.xlu0 %v601, 32
      %v1346 = vpop.permute.xlu0 %1345
      %1347 = vrot.lane.b32.xlu0 %v612, 32
      %v1348 = vpop.permute.xlu0 %1347
      %1349 = vrot.lane.b32.xlu0 %v614, 32
      %v1350 = vpop.permute.xlu0 %1349
      %v1383 = vsel %vm172, %v325, %v616
      %v1384 = vsel %vm172, %v326, %v618
      %v1385 = vsel %vm172, %v328, %v620
      %v1386 = vsel %vm172, %v329, %v622
      %v1387 = vsel %vm172, %v331, %v624
      %v1388 = vsel %vm172, %v332, %v626
      %v1389 = vsel %vm172, %v334, %v628
      %v1390 = vsel %vm172, %v335, %v630
      %v1391 = vsel %vm172, %v337, %v632
      %v1392 = vsel %vm172, %v338, %v634
      %v1393 = vsel %vm172, %v340, %v636
      %v1394 = vsel %vm172, %v341, %v638
      %v1395 = vsel %vm172, %v343, %v640
      %v1396 = vsel %vm172, %v344, %v642
      %v1397 = vsel %vm172, %v346, %v644
      %v1398 = vsel %vm172, %v347, %v646
      %v1399 = vsel %vm172, %v349, %v648
      %v1400 = vsel %vm172, %v350, %v650
      %v1401 = vsel %vm172, %v352, %v652
      %v1402 = vsel %vm172, %v353, %v654
      %v1403 = vsel %vm172, %v355, %v656
      %v1404 = vsel %vm172, %v356, %v658
      %v1405 = vsel %vm172, %v358, %v660
      %v1406 = vsel %vm172, %v359, %v662
      %v1407 = vsel %vm172, %v361, %v664
      %v1408 = vsel %vm172, %v362, %v666
      %v1409 = vsel %vm172, %v364, %v668
      %v1410 = vsel %vm172, %v365, %v670
      %v1411 = vsel %vm172, %v367, %v672
      %v1412 = vsel %vm172, %v368, %v674
      %v1413 = vsel %vm172, %v370, %v676
      %v1414 = vsel %vm172, %v371, %v678
      %vm1415 = vcmask 64512
      %v1416 = vsel %vm1415, %v1383, %v712
      %v1417 = vsel %vm1415, %v1384, %v714
      %v1418 = vsel %vm1415, %v1385, %v716
      %v1419 = vsel %vm1415, %v1386, %v718
      %v1420 = vsel %vm1415, %v1387, %v720
      %v1421 = vsel %vm1415, %v1388, %v722
      %v1422 = vsel %vm1415, %v1389, %v724
      %v1423 = vsel %vm1415, %v1390, %v726
      %v1424 = vsel %vm1415, %v1391, %v728
      %v1425 = vsel %vm1415, %v1392, %v730
      %v1426 = vsel %vm1415, %v1393, %v732
      %v1427 = vsel %vm1415, %v1394, %v734
      %v1428 = vsel %vm1415, %v1395, %v736
      %v1429 = vsel %vm1415, %v1396, %v738
      %v1430 = vsel %vm1415, %v1397, %v740
      %v1431 = vsel %vm1415, %v1398, %v742
      %v1432 = vsel %vm1415, %v1399, %v744
      %v1433 = vsel %vm1415, %v1400, %v746
      %v1434 = vsel %vm1415, %v1401, %v748
      %v1435 = vsel %vm1415, %v1402, %v750
      %v1436 = vsel %vm1415, %v1403, %v752
      %v1437 = vsel %vm1415, %v1404, %v754
      %v1438 = vsel %vm1415, %v1405, %v756
      %v1439 = vsel %vm1415, %v1406, %v758
      %v1440 = vsel %vm1415, %v1407, %v760
      %v1441 = vsel %vm1415, %v1408, %v762
      %v1442 = vsel %vm1415, %v1409, %v764
      %v1443 = vsel %vm1415, %v1410, %v766
      %v1444 = vsel %vm1415, %v1411, %v768
      %v1445 = vsel %vm1415, %v1412, %v770
      %v1446 = vsel %vm1415, %v1413, %v772
      %v1447 = vsel %vm1415, %v1414, %v774
      %vm1448 = vcmask 97280
      %v1449 = vsel %vm1448, %v1416, %v808
      %v1450 = vsel %vm1448, %v1417, %v810
      %v1451 = vsel %vm1448, %v1418, %v812
      %v1452 = vsel %vm1448, %v1419, %v814
      %v1453 = vsel %vm1448, %v1420, %v816
      %v1454 = vsel %vm1448, %v1421, %v818
      %v1455 = vsel %vm1448, %v1422, %v820
      %v1456 = vsel %vm1448, %v1423, %v822
      %v1457 = vsel %vm1448, %v1424, %v824
      %v1458 = vsel %vm1448, %v1425, %v826
      %v1459 = vsel %vm1448, %v1426, %v828
      %v1460 = vsel %vm1448, %v1427, %v830
      %v1461 = vsel %vm1448, %v1428, %v832
      %v1462 = vsel %vm1448, %v1429, %v834
      %v1463 = vsel %vm1448, %v1430, %v836
      %v1464 = vsel %vm1448, %v1431, %v838
      %v1465 = vsel %vm1448, %v1432, %v840
      %v1466 = vsel %vm1448, %v1433, %v842
      %v1467 = vsel %vm1448, %v1434, %v844
      %v1468 = vsel %vm1448, %v1435, %v846
      %v1469 = vsel %vm1448, %v1436, %v848
      %v1470 = vsel %vm1448, %v1437, %v850
      %v1471 = vsel %vm1448, %v1438, %v852
      %v1472 = vsel %vm1448, %v1439, %v854
      %v1473 = vsel %vm1448, %v1440, %v856
      %v1474 = vsel %vm1448, %v1441, %v858
      %v1475 = vsel %vm1448, %v1442, %v860
      %v1476 = vsel %vm1448, %v1443, %v862
      %v1477 = vsel %vm1448, %v1444, %v864
      %v1478 = vsel %vm1448, %v1445, %v866
      %v1479 = vsel %vm1448, %v1446, %v868
      %v1480 = vsel %vm1448, %v1447, %v870
      %vm1481 = vcmask 130048
      %v1482 = vsel %vm1481, %v1449, %v904
      %v1483 = vsel %vm1481, %v1450, %v906
      %v1484 = vsel %vm1481, %v1451, %v908
      %v1485 = vsel %vm1481, %v1452, %v910
      %v1486 = vsel %vm1481, %v1453, %v912
      %v1487 = vsel %vm1481, %v1454, %v914
      %v1488 = vsel %vm1481, %v1455, %v916
      %v1489 = vsel %vm1481, %v1456, %v918
      %v1490 = vsel %vm1481, %v1457, %v920
      %v1491 = vsel %vm1481, %v1458, %v922
      %v1492 = vsel %vm1481, %v1459, %v924
      %v1493 = vsel %vm1481, %v1460, %v926
      %v1494 = vsel %vm1481, %v1461, %v928
      %v1495 = vsel %vm1481, %v1462, %v930
      %v1496 = vsel %vm1481, %v1463, %v932
      %v1497 = vsel %vm1481, %v1464, %v934
      %v1498 = vsel %vm1481, %v1465, %v936
      %v1499 = vsel %vm1481, %v1466, %v938
      %v1500 = vsel %vm1481, %v1467, %v940
      %v1501 = vsel %vm1481, %v1468, %v942
      %v1502 = vsel %vm1481, %v1469, %v944
      %v1503 = vsel %vm1481, %v1470, %v946
      %v1504 = vsel %vm1481, %v1471, %v948
      %v1505 = vsel %vm1481, %v1472, %v950
      %v1506 = vsel %vm1481, %v1473, %v952
      %v1507 = vsel %vm1481, %v1474, %v954
      %v1508 = vsel %vm1481, %v1475, %v956
      %v1509 = vsel %vm1481, %v1476, %v958
      %v1510 = vsel %vm1481, %v1477, %v960
      %v1511 = vsel %vm1481, %v1478, %v962
      %v1512 = vsel %vm1481, %v1479, %v964
      %v1513 = vsel %vm1481, %v1480, %v966
      %vm1514 = vcmask 162816
      %v1515 = vsel %vm1514, %v1482, %v1000
      %v1516 = vsel %vm1514, %v1483, %v1002
      %v1517 = vsel %vm1514, %v1484, %v1004
      %v1518 = vsel %vm1514, %v1485, %v1006
      %v1519 = vsel %vm1514, %v1486, %v1008
      %v1520 = vsel %vm1514, %v1487, %v1010
      %v1521 = vsel %vm1514, %v1488, %v1012
      %v1522 = vsel %vm1514, %v1489, %v1014
      %v1523 = vsel %vm1514, %v1490, %v1016
      %v1524 = vsel %vm1514, %v1491, %v1018
      %v1525 = vsel %vm1514, %v1492, %v1020
      %v1526 = vsel %vm1514, %v1493, %v1022
      %v1527 = vsel %vm1514, %v1494, %v1024
      %v1528 = vsel %vm1514, %v1495, %v1026
      %v1529 = vsel %vm1514, %v1496, %v1028
      %v1530 = vsel %vm1514, %v1497, %v1030
      %v1531 = vsel %vm1514, %v1498, %v1032
      %v1532 = vsel %vm1514, %v1499, %v1034
      %v1533 = vsel %vm1514, %v1500, %v1036
      %v1534 = vsel %vm1514, %v1501, %v1038
      %v1535 = vsel %vm1514, %v1502, %v1040
      %v1536 = vsel %vm1514, %v1503, %v1042
      %v1537 = vsel %vm1514, %v1504, %v1044
      %v1538 = vsel %vm1514, %v1505, %v1046
      %v1539 = vsel %vm1514, %v1506, %v1048
      %v1540 = vsel %vm1514, %v1507, %v1050
      %v1541 = vsel %vm1514, %v1508, %v1052
      %v1542 = vsel %vm1514, %v1509, %v1054
      %v1543 = vsel %vm1514, %v1510, %v1056
      %v1544 = vsel %vm1514, %v1511, %v1058
      %v1545 = vsel %vm1514, %v1512, %v1060
      %v1546 = vsel %vm1514, %v1513, %v1062
      %vm1547 = vcmask 195584
      %v1548 = vsel %vm1547, %v1515, %v1096
      %v1549 = vsel %vm1547, %v1516, %v1098
      %v1550 = vsel %vm1547, %v1517, %v1100
      %v1551 = vsel %vm1547, %v1518, %v1102
      %v1552 = vsel %vm1547, %v1519, %v1104
      %v1553 = vsel %vm1547, %v1520, %v1106
      %v1554 = vsel %vm1547, %v1521, %v1108
      %v1555 = vsel %vm1547, %v1522, %v1110
      %v1556 = vsel %vm1547, %v1523, %v1112
      %v1557 = vsel %vm1547, %v1524, %v1114
      %v1558 = vsel %vm1547, %v1525, %v1116
      %v1559 = vsel %vm1547, %v1526, %v1118
      %v1560 = vsel %vm1547, %v1527, %v1120
      %v1561 = vsel %vm1547, %v1528, %v1122
      %v1562 = vsel %vm1547, %v1529, %v1124
      %v1563 = vsel %vm1547, %v1530, %v1126
      %v1564 = vsel %vm1547, %v1531, %v1128
      %v1565 = vsel %vm1547, %v1532, %v1130
      %v1566 = vsel %vm1547, %v1533, %v1132
      %v1567 = vsel %vm1547, %v1534, %v1134
      %v1568 = vsel %vm1547, %v1535, %v1136
      %v1569 = vsel %vm1547, %v1536, %v1138
      %v1570 = vsel %vm1547, %v1537, %v1140
      %v1571 = vsel %vm1547, %v1538, %v1142
      %v1572 = vsel %vm1547, %v1539, %v1144
      %v1573 = vsel %vm1547, %v1540, %v1146
      %v1574 = vsel %vm1547, %v1541, %v1148
      %v1575 = vsel %vm1547, %v1542, %v1150
      %v1576 = vsel %vm1547, %v1543, %v1152
      %v1577 = vsel %vm1547, %v1544, %v1154
      %v1578 = vsel %vm1547, %v1545, %v1156
      %v1579 = vsel %vm1547, %v1546, %v1158
      %vm1580 = vcmask 228352
      %v1581 = vsel %vm1580, %v1548, %v1192
      %v1582 = vsel %vm1580, %v1549, %v1194
      %v1583 = vsel %vm1580, %v1550, %v1196
      %v1584 = vsel %vm1580, %v1551, %v1198
      %v1585 = vsel %vm1580, %v1552, %v1200
      %v1586 = vsel %vm1580, %v1553, %v1202
      %v1587 = vsel %vm1580, %v1554, %v1204
      %v1588 = vsel %vm1580, %v1555, %v1206
      %v1589 = vsel %vm1580, %v1556, %v1208
      %v1590 = vsel %vm1580, %v1557, %v1210
      %v1591 = vsel %vm1580, %v1558, %v1212
      %v1592 = vsel %vm1580, %v1559, %v1214
      %v1593 = vsel %vm1580, %v1560, %v1216
      %v1594 = vsel %vm1580, %v1561, %v1218
      %v1595 = vsel %vm1580, %v1562, %v1220
      %v1596 = vsel %vm1580, %v1563, %v1222
      %v1597 = vsel %vm1580, %v1564, %v1224
      %v1598 = vsel %vm1580, %v1565, %v1226
      %v1599 = vsel %vm1580, %v1566, %v1228
      %v1600 = vsel %vm1580, %v1567, %v1230
      %v1601 = vsel %vm1580, %v1568, %v1232
      %v1602 = vsel %vm1580, %v1569, %v1234
      %v1603 = vsel %vm1580, %v1570, %v1236
      %v1604 = vsel %vm1580, %v1571, %v1238
      %v1605 = vsel %vm1580, %v1572, %v1240
      %v1606 = vsel %vm1580, %v1573, %v1242
      %v1607 = vsel %vm1580, %v1574, %v1244
      %v1608 = vsel %vm1580, %v1575, %v1246
      %v1609 = vsel %vm1580, %v1576, %v1248
      %v1610 = vsel %vm1580, %v1577, %v1250
      %v1611 = vsel %vm1580, %v1578, %v1252
      %v1612 = vsel %vm1580, %v1579, %v1254
      %vm1613 = vcmask 261120
      %v1614 = vsel %vm1613, %v1581, %v1288
      %v1615 = vsel %vm1613, %v1582, %v1290
      %v1616 = vsel %vm1613, %v1583, %v1292
      %v1617 = vsel %vm1613, %v1584, %v1294
      %v1618 = vsel %vm1613, %v1585, %v1296
      %v1619 = vsel %vm1613, %v1586, %v1298
      %v1620 = vsel %vm1613, %v1587, %v1300
      %v1621 = vsel %vm1613, %v1588, %v1302
      %v1622 = vsel %vm1613, %v1589, %v1304
      %v1623 = vsel %vm1613, %v1590, %v1306
      %v1624 = vsel %vm1613, %v1591, %v1308
      %v1625 = vsel %vm1613, %v1592, %v1310
      %v1626 = vsel %vm1613, %v1593, %v1312
      %v1627 = vsel %vm1613, %v1594, %v1314
      %v1628 = vsel %vm1613, %v1595, %v1316
      %v1629 = vsel %vm1613, %v1596, %v1318
      %v1630 = vsel %vm1613, %v1597, %v1320
      %v1631 = vsel %vm1613, %v1598, %v1322
      %v1632 = vsel %vm1613, %v1599, %v1324
      %v1633 = vsel %vm1613, %v1600, %v1326
      %v1634 = vsel %vm1613, %v1601, %v1328
      %v1635 = vsel %vm1613, %v1602, %v1330
      %v1636 = vsel %vm1613, %v1603, %v1332
      %v1637 = vsel %vm1613, %v1604, %v1334
      %v1638 = vsel %vm1613, %v1605, %v1336
      %v1639 = vsel %vm1613, %v1606, %v1338
      %v1640 = vsel %vm1613, %v1607, %v1340
      %v1641 = vsel %vm1613, %v1608, %v1342
      %v1642 = vsel %vm1613, %v1609, %v1344
      %v1643 = vsel %vm1613, %v1610, %v1346
      %v1644 = vsel %vm1613, %v1611, %v1348
      %v1645 = vsel %vm1613, %v1612, %v1350
      %v1646 = vpack.c.bf16 %v1615, %v1614
      %v1647 = vpack.c.bf16 %v1617, %v1616
      %v1648 = vpack.c.bf16 %v1619, %v1618
      %v1649 = vpack.c.bf16 %v1621, %v1620
      %v1650 = vpack.c.bf16 %v1623, %v1622
      %v1651 = vpack.c.bf16 %v1625, %v1624
      %v1652 = vpack.c.bf16 %v1627, %v1626
      %v1653 = vpack.c.bf16 %v1629, %v1628
      %v1654 = vpack.c.bf16 %v1631, %v1630
      %v1655 = vpack.c.bf16 %v1633, %v1632
      %v1656 = vpack.c.bf16 %v1635, %v1634
      %v1657 = vpack.c.bf16 %v1637, %v1636
      %v1658 = vpack.c.bf16 %v1639, %v1638
      %v1659 = vpack.c.bf16 %v1641, %v1640
      %v1660 = vpack.c.bf16 %v1643, %v1642
      %v1661 = vpack.c.bf16 %v1645, %v1644
      %v1662 = vld [vmem:[%s1] sm:$0xf]
      %v1663 = vld [vmem:[%s2] sm:$0xff]
      %1665 = vset.pattern.permute.xlu0 0
      %1666 = vperm.xlu0 %1665, %v1663
      %v1667 = vpop.permute.xlu0 %1666
      %vm1669 = vcmask 293888
      %v1671 = vsel %vm1669, %v1662, 0
      %v1674 = vsel %vm1669, %v1646, 0
      %v1677 = vsel %vm1669, %v1647, 0
      %v1680 = vsel %vm1669, %v1648, 0
      %v1683 = vsel %vm1669, %v1649, 0
      %v1686 = vsel %vm1669, %v1650, 0
      %v1689 = vsel %vm1669, %v1651, 0
      %v1692 = vsel %vm1669, %v1652, 0
      %v1695 = vsel %vm1669, %v1653, 0
      %v1698 = vsel %vm1669, %v1654, 0
      %v1701 = vsel %vm1669, %v1655, 0
      %v1704 = vsel %vm1669, %v1656, 0
      %v1707 = vsel %vm1669, %v1657, 0
      %v1710 = vsel %vm1669, %v1658, 0
      %v1713 = vsel %vm1669, %v1659, 0
      %v1716 = vsel %vm1669, %v1660, 0
      %v1719 = vsel %vm1669, %v1661, 0
      %1721 = vmatprep.subr.bf16.mxu0 0
      %1722 = vmatpush1.bf16.xpose.msra.mxu0 %v1674
      %1723 = vmatprep.subr.bf16.mxu0 0
      %1724 = vmatpush1.bf16.xpose.msra.mxu0 %v1677
      %1725 = vmatprep.subr.bf16.mxu0 0
      %1726 = vmatpush1.bf16.xpose.msra.mxu0 %v1680
      %1727 = vmatprep.subr.bf16.mxu0 0
      %1728 = vmatpush1.bf16.xpose.msra.mxu0 %v1683
      %1729 = vmatprep.subr.bf16.mxu0 0
      %1730 = vmatpush1.bf16.xpose.msra.mxu0 %v1686
      %1731 = vmatprep.subr.bf16.mxu0 0
      %1732 = vmatpush1.bf16.xpose.msra.mxu0 %v1689
      %1733 = vmatprep.subr.bf16.mxu0 0
      %1734 = vmatpush1.bf16.xpose.msra.mxu0 %v1692
      %1735 = vmatprep.subr.bf16.mxu0 0
      %1736 = vmatpush1.bf16.xpose.msra.mxu0 %v1695
      %1737 = vmatprep.subr.bf16.mxu0 0
      %1738 = vmatpush1.bf16.xpose.msra.mxu0 %v1698
      %1739 = vmatprep.subr.bf16.mxu0 0
      %1740 = vmatpush1.bf16.xpose.msra.mxu0 %v1701
      %1741 = vmatprep.subr.bf16.mxu0 0
      %1742 = vmatpush1.bf16.xpose.msra.mxu0 %v1704
      %1743 = vmatprep.subr.bf16.mxu0 0
      %1744 = vmatpush1.bf16.xpose.msra.mxu0 %v1707
      %1745 = vmatprep.subr.bf16.mxu0 0
      %1746 = vmatpush1.bf16.xpose.msra.mxu0 %v1710
      %1747 = vmatprep.subr.bf16.mxu0 0
      %1748 = vmatpush1.bf16.xpose.msra.mxu0 %v1713
      %1749 = vmatprep.subr.bf16.mxu0 0
      %1750 = vmatpush1.bf16.xpose.msra.mxu0 %v1716
      %1751 = vmatprep.subr.bf16.mxu0 0
      %1752 = vmatpush1.bf16.xpose.msra.mxu0 %v1719
      %1753 = vmatprep.mubr.bf16.mxu0 0
      %1754 = vmatmul.mubr.bf16.gmra.mrb[0].mxu0 %v1671
      %v1755 = vpop.f32.mrb[0].mxu0
      %v1756 = vadd.f32 %v1667, %v1755
      %v1757 = vpop.f32.mrb[0].mxu0
      %v1758 = vadd.f32 %v1667, %v1757
      %v1759 = vpop.f32.mrb[0].mxu0
      %v1760 = vpop.f32.mrb[0].mxu0
      %1761 = vdwg.mxu0
      %vm1762 = vcmp.gt.f32.partialorder %v1756, 0.0
      %vm1763 = vcmp.gt.f32.partialorder %v1758, 0.0
      %v1764 = vmul.f32 %v1756, 1.442695
      %v1765 = vpow.pop %v1764
      %v1766 = vmul.f32 %v1758, 1.442695
      %v1767 = vpow.pop %v1766
      %v1768 = vsub.f32 %v1765, 1.0
      %v1769 = vsub.f32 %v1767, 1.0
      %v1770 = vsel %vm1762, %v1756, %v1768
      %v1771 = vsel %vm1763, %v1758, %v1769
      %1772 = vst [vmem:[%s170] sm:$0xff] %v1770
      %1773 = vst [vmem:[%s170 + $0x8] sm:$0xff] %v1771
      %p1774 = scmp.lt.s32.totalorder %s14, 1
      %s1775 = scalar_select %p1774, %s14, 1
      %s1776 = smul.addr %s1775, 2
      %s1777 = smul.addr %s1776, 8
      %s1778 = scalar_lea.vmem %s3, %s1777
      // Predicated region
      $region33: #{conv_same_elu.1} parent=31 // pred_check
        %p1779 = pneg %p100
      $region34: #{conv_same_elu.1} parent=31 // pred_check_branch
        %1781 = sbr.rel (%p1779) target = $region36
      $region35: #{conv_same_elu.1} parent=31 // pred_region
        _
      $region36: #{conv_same_elu.1} parent=31 // pred_fallthru
        _
    $region32: #{conv_same_elu.1} parent=5 // pred_fallthru
      _
    %p1782 = scmp.le.s32.totalorder 2, %s9
    // Predicated region
    $region37: #{conv_same_elu.1} parent=5 // pred_check
      %p1783 = pneg %p1782
    $region38: #{conv_same_elu.1} parent=5 // pred_check_branch
      %1785 = sbr.rel (%p1783) target = $region40
    $region39: #{conv_same_elu.1} parent=5 // pred_region
      %s1786 = ssub.s32 %s9, 2
      // Predicated region
      $region41: #{conv_same_elu.1} parent=39 // pred_check
        %p1787 = pneg %p106
      $region42: #{conv_same_elu.1} parent=39 // pred_check_branch
        %1789 = sbr.rel (%p1787) target = $region44
      $region43: #{conv_same_elu.1} parent=39 // pred_region
        %p1790 = scmp.lt.s32.totalorder %s15, 1
        %s1791 = scalar_select %p1790, %s15, 1
        %s1792 = smul.addr %s1791, 2
        %s1793 = smul.addr %s1792, 8
        %s1794 = scalar_lea.vmem %s3, %s1793
      $region44: #{conv_same_elu.1} parent=39 // pred_fallthru
        _
    $region40: #{conv_same_elu.1} parent=5 // pred_fallthru
      _
  $region6: #{conv_same_elu.1} parent=0 // loop_footer
    %s13 = sadd.s32 1, %s9
  $region7: #{conv_same_elu.1} parent=0 // loop_footer_branch
    %8 = sbr.rel target = $region3
  $region8: #{conv_same_elu.1} parent=0 // loop_exit
    _

</llo_original>
